<compile_context>
chip_gen: v7x
topology: tpu7x:2x2x1
jax: 0.10.0
libtpu: 0.0.40
codegen_flags: <defaults>
</compile_context>

<pallas_src>
import functools
import math

import jax
import jax.numpy as jnp
from jax.experimental import pallas as pl
from jax.experimental.pallas import tpu as pltpu


def _rnn_rollout_kernel(xt_ref, w_ih_ref, w_hh_ref, w_sum_ref, b_ref,
                        o_ref, xp_ref, *, prediction_steps, n_steps, batch):
    # xt_ref   : (A_blk, W*B, I)    teacher-forced inputs, window-major rows
    # w_ih_ref : (A_blk, I, 4H)     W_ih^T   (g-gate columns pre-scaled by 2)
    # w_hh_ref : (A_blk, H, 4H)     W_hh^T   (g-gate columns pre-scaled by 2)
    # w_sum_ref: (A_blk, H, 4H)     W_ih^T + W_hh^T  (free steps: x == h)
    # b_ref    : (A_blk, 1, 4H)     b_ih + b_hh (g-gate columns pre-scaled by 2)
    # o_ref    : (W, A_blk, B, P*H) per-window outputs (P steps lane-concatenated)
    # xp_ref   : (W, A_blk, B, 4H)  scratch: x_t @ W_ih for every teacher step
    A_blk, _, I = xt_ref.shape
    H = I
    B = batch
    P = prediction_steps
    n_windows = xp_ref.shape[0]          # == ceil(n_steps / P)
    n_full = n_steps // P                # full prediction windows
    rem = n_steps - n_full * P           # ragged tail steps

    # --- prologue: ALL teacher-forced input projections in ONE batched matmul
    #     (off the serial recurrent chain, M = W*B per atom for MXU fill). ---
    xp_flat = jnp.einsum('ami,aig->amg',
                         xt_ref[...].astype(jnp.float32), w_ih_ref[...],
                         preferred_element_type=jnp.float32)   # (A_blk, W*B, 4H)
    for w in range(n_windows):           # static, cheap vector copies
        xp_ref[w] = xp_flat[:, w * B:(w + 1) * B, :]

    def lstm_cell(gates, c):
        # g-gate columns of W/b were scaled by 2 in the wrapper, so
        # tanh(g) == 2*sigmoid(gates_g) - 1: a single sigmoid over the full 4H
        # plus one tanh over H, instead of sigmoid(4H) + tanh(4H) + tanh(H).
        sg = jax.nn.sigmoid(gates + b_ref[...])
        i_g = sg[..., 0 * H:1 * H]       # PyTorch gate order: i, f, g, o
        f_g = sg[..., 1 * H:2 * H]
        g_g = 2.0 * sg[..., 2 * H:3 * H] - 1.0
        o_g = sg[..., 3 * H:4 * H]
        c_new = f_g * c + i_g * g_g
        h_new = o_g * jnp.tanh(c_new)
        return h_new, c_new

    def teacher_step(widx, h, c):
        # gates = x_t @ W_ih (precomputed) + h @ W_hh  -> one matmul on chain
        gates = xp_ref[widx] + jnp.einsum('abh,ahg->abg', h, w_hh_ref[...],
                                          preferred_element_type=jnp.float32)
        return lstm_cell(gates, c)

    def free_step(h, c):
        # free running: x == previous output == h, so gates = h @ (W_ih + W_hh)
        gates = jnp.einsum('abh,ahg->abg', h, w_sum_ref[...],
                           preferred_element_type=jnp.float32)
        return lstm_cell(gates, c)

    h0 = jnp.zeros((A_blk, B, H), jnp.float32)
    c0 = jnp.zeros((A_blk, B, H), jnp.float32)

    def window_body(w, carry):
        h, c = carry
        h, c = teacher_step(w, h, c)
        hs = [h]
        for _ in range(1, P):            # statically unrolled free steps
            h, c = free_step(h, c)
            hs.append(h)
        # one lane-dense store per window (P*H lanes) instead of P stores of H.
        o_ref[w] = jnp.concatenate(hs, axis=-1).astype(o_ref.dtype)
        return h, c

    h, c = jax.lax.fori_loop(0, n_full, window_body, (h0, c0))

    if rem > 0:                          # ragged tail window (< P steps)
        h, c = teacher_step(n_full, h, c)
        hs = [h]
        for _ in range(1, rem):
            h, c = free_step(h, c)
            hs.append(h)
        if rem < P:
            hs.append(jnp.zeros((A_blk, B, (P - rem) * H), jnp.float32))
        o_ref[n_full] = jnp.concatenate(hs, axis=-1).astype(o_ref.dtype)


def rnn_model_forward(inputs, weight_ih, weight_hh, bias_ih, bias_hh,
                      prediction_steps, *, atoms_per_block=None):
    """Forward pass of RNNModel.

    inputs    : [B, A, T, I]                        (PyTorch convention)
    weight_ih : [A, 4H, I],  weight_hh: [A, 4H, H]  (nn.LSTM parameters, H == I)
    bias_ih   : [A, 4H],     bias_hh:   [A, 4H]
    returns   : [B, A, T-1, H]
    """
    B, A, T, I = inputs.shape
    H = I
    P = int(prediction_steps)
    assert T >= 2 and P >= 1
    n_steps = T - 1
    n_full = n_steps // P
    rem = n_steps - n_full * P
    n_windows = n_full + (1 if rem else 0)          # == ceil(n_steps / P)

    if atoms_per_block is None:
        # >1 grid step pipelines input DMA / output writeback against the
        # recurrence and lets v7x's two TensorCores split the atom chains.
        atoms_per_block = A if A <= 1 else -(-A // 2)
    A_blk = max(1, min(int(atoms_per_block), A))
    n_blocks = -(-A // A_blk)
    A_pad = n_blocks * A_blk

    f32 = jnp.float32
    # Scale the g-gate (cell-input) columns by 2 so the kernel can use
    # tanh(x) == 2*sigmoid(2x) - 1 (halves per-step transcendental work).
    g_scale = jnp.concatenate([jnp.ones((2 * H,), f32),
                               jnp.full((H,), 2.0, f32),
                               jnp.ones((H,), f32)])
    w_ih_t = jnp.transpose(weight_ih.astype(f32), (0, 2, 1)) * g_scale   # (A, I, 4H)
    w_hh_t = jnp.transpose(weight_hh.astype(f32), (0, 2, 1)) * g_scale   # (A, H, 4H)
    w_sum = w_ih_t + w_hh_t                                              # (A, H, 4H)
    bias = ((bias_ih + bias_hh).astype(f32) * g_scale)[:, None, :]       # (A, 1, 4H)

    # Only the teacher-forced timesteps ever reach the kernel (P x less DMA).
    x_teach = inputs[:, :, :n_steps:P, :]                   # (B, A, W, I)
    x_teach = jnp.transpose(x_teach, (1, 2, 0, 3))          # (A, W, B, I)
    x_teach = x_teach.reshape(A, n_windows * B, I)          # window-major rows

    def pad_atoms(x):
        if A_pad == A:
            return x
        return jnp.pad(x, [(0, A_pad - A)] + [(0, 0)] * (x.ndim - 1))

    x_teach, w_ih_t, w_hh_t, w_sum, bias = map(
        pad_atoms, (x_teach, w_ih_t, w_hh_t, w_sum, bias))

    kernel = functools.partial(_rnn_rollout_kernel, prediction_steps=P,
                               n_steps=n_steps, batch=B)

    # Explicit VMEM budget: double-buffered blocks + scratch + slack, kept
    # well under v7x's 64 MiB physical VMEM.
    fp = 4
    block_bytes = fp * (A_blk * n_windows * B * I           # x_teach block
                        + A_blk * I * 4 * H                 # w_ih block
                        + 2 * A_blk * H * 4 * H             # w_hh + w_sum blocks
                        + A_blk * 1 * 4 * H                 # bias block
                        + n_windows * A_blk * B * P * H)    # output block
    scratch_bytes = fp * n_windows * A_blk * B * 4 * H
    vmem_limit = int(min(64 << 20,
                         max(16 << 20,
                             3 * block_bytes + scratch_bytes + (2 << 20))))

    out_raw = pl.pallas_call(
        kernel,
        out_shape=jax.ShapeDtypeStruct((n_windows, A_pad, B, P * H), inputs.dtype),
        grid_spec=pltpu.PrefetchScalarGridSpec(
            num_scalar_prefetch=0,
            grid=(n_blocks,),
            in_specs=[
                pl.BlockSpec((A_blk, n_windows * B, I), lambda a: (a, 0, 0)),
                pl.BlockSpec((A_blk, I, 4 * H), lambda a: (a, 0, 0)),
                pl.BlockSpec((A_blk, H, 4 * H), lambda a: (a, 0, 0)),
                pl.BlockSpec((A_blk, H, 4 * H), lambda a: (a, 0, 0)),
                pl.BlockSpec((A_blk, 1, 4 * H), lambda a: (a, 0, 0)),
            ],
            out_specs=pl.BlockSpec((n_windows, A_blk, B, P * H),
                                   lambda a: (0, a, 0, 0)),
            scratch_shapes=[
                pltpu.VMEM((n_windows, A_blk, B, 4 * H), jnp.float32),
            ],
        ),
        compiler_params=pltpu.CompilerParams(
            dimension_semantics=("parallel",),
            vmem_limit_bytes=vmem_limit),
    )(x_teach, w_ih_t, w_hh_t, w_sum, bias)

    # Window-major -> [B, A, T-1, H] relayout in plain XLA (cheap, overlapped).
    out = out_raw.reshape(n_windows, A_pad, B, P, H)
    out = jnp.transpose(out, (2, 1, 0, 3, 4)).reshape(B, A_pad, n_windows * P, H)
    return out[:, :A, :n_steps, :]


def _reference_forward(inputs, weight_ih, weight_hh, bias_ih, bias_hh,
                       prediction_steps):
    """Pure-JAX mirror of the PyTorch forward (independent correctness check)."""
    B, A, T, I = inputs.shape
    H = I
    outputs = []
    for a in range(A):
        ins = inputs[:, a, :, :]
        h = jnp.zeros((B, H), jnp.float32)
        c = jnp.zeros((B, H), jnp.float32)
        outs = []
        for step in range(T - 1):
            if step % prediction_steps == 0:
                x = ins[:, step, :]
            else:
                x = outs[step - 1]
            gates = (x @ weight_ih[a].T + bias_ih[a]
                     + h @ weight_hh[a].T + bias_hh[a])
            i_g = jax.nn.sigmoid(gates[:, 0 * H:1 * H])
            f_g = jax.nn.sigmoid(gates[:, 1 * H:2 * H])
            g_g = jnp.tanh(gates[:, 2 * H:3 * H])
            o_g = jax.nn.sigmoid(gates[:, 3 * H:4 * H])
            c = f_g * c + i_g * g_g
            h = o_g * jnp.tanh(c)
            outs.append(h)
        outputs.append(jnp.stack(outs, axis=1))
    return jnp.stack(outputs, axis=1)


if __name__ == "__main__":
    # Shapes implied by the module's forward: inputs [batch, num_atoms, T, I],
    # nn.LSTM(input_size, input_size) per atom.
    batch, num_atoms, timesteps, input_size = 2, 3, 8, 32
    hidden = input_size
    prediction_steps = 2

    key = jax.random.PRNGKey(0)
    k_x, k_wi, k_wh, k_bi, k_bh = jax.random.split(key, 5)
    stdv = 1.0 / math.sqrt(hidden)      # PyTorch LSTM default init range

    inputs = jax.random.normal(
        k_x, (batch, num_atoms, timesteps, input_size), dtype=jnp.float32)
    weight_ih = jax.random.uniform(
        k_wi, (num_atoms, 4 * hidden, input_size),
        minval=-stdv, maxval=stdv, dtype=jnp.float32)
    weight_hh = jax.random.uniform(
        k_wh, (num_atoms, 4 * hidden, hidden),
        minval=-stdv, maxval=stdv, dtype=jnp.float32)
    bias_ih = jax.random.uniform(
        k_bi, (num_atoms, 4 * hidden), minval=-stdv, maxval=stdv,
        dtype=jnp.float32)
    bias_hh = jax.random.uniform(
        k_bh, (num_atoms, 4 * hidden), minval=-stdv, maxval=stdv,
        dtype=jnp.float32)

    out = rnn_model_forward(inputs, weight_ih, weight_hh, bias_ih, bias_hh,
                            prediction_steps)
    out = jax.block_until_ready(out)
    assert out.shape == (batch, num_atoms, timesteps - 1, input_size), out.shape

    ref = _reference_forward(inputs, weight_ih, weight_hh, bias_ih, bias_hh,
                             prediction_steps)
    # Tolerance covers the (mathematically exact) rewrites: h @ (W_ih + W_hh)
    # on free steps, hoisted x @ W_ih, and tanh(x) = 2*sigmoid(2x) - 1 via
    # pre-scaled g-gate columns; agreement is ~1e-6 in practice.
    assert jnp.allclose(out, ref, atol=1e-4, rtol=1e-4), \
        float(jnp.max(jnp.abs(out - ref)))

    print("KERNEL_OK")
</pallas_src>

<mosaic_0001>
module attributes {stable_mosaic.version = 11 : i64} {
  func.func @_rnn_rollout_kernel(%arg0: i32, %arg1: memref<2x8x32xf32, #tpu.memory_space<vmem>>, %arg2: memref<2x32x128xf32, #tpu.memory_space<vmem>>, %arg3: memref<2x32x128xf32, #tpu.memory_space<vmem>>, %arg4: memref<2x32x128xf32, #tpu.memory_space<vmem>>, %arg5: memref<2x1x128xf32, #tpu.memory_space<vmem>>, %arg6: memref<4x2x2x64xf32, #tpu.memory_space<vmem>>, %arg7: memref<4x2x2x128xf32, #tpu.memory_space<vmem>>) attributes {dimension_semantics = [#tpu.dimension_semantics<parallel>], iteration_bounds = array<i64: 2>, scalar_prefetch = 0 : i64, scratch_operands = 1 : i64, tpu.core_type = #tpu.core_type<tc>, window_params = [{transform_indices = @transform_0, window_bounds = array<i64: 2, 8, 32>}, {transform_indices = @transform_1, window_bounds = array<i64: 2, 32, 128>}, {transform_indices = @transform_2, window_bounds = array<i64: 2, 32, 128>}, {transform_indices = @transform_3, window_bounds = array<i64: 2, 32, 128>}, {transform_indices = @transform_4, window_bounds = array<i64: 2, 1, 128>}, {transform_indices = @transform_5, window_bounds = array<i64: 4, 2, 2, 64>}]} {
    %c0 = arith.constant 0 : index
    %c0_0 = arith.constant 0 : index
    %c0_1 = arith.constant 0 : index
    %0 = vector.load %arg1[%c0, %c0_0, %c0_1] : memref<2x8x32xf32, #tpu.memory_space<vmem>>, vector<2x8x32xf32>
    %c0_2 = arith.constant 0 : index
    %c0_3 = arith.constant 0 : index
    %c0_4 = arith.constant 0 : index
    %1 = vector.load %arg2[%c0_2, %c0_3, %c0_4] : memref<2x32x128xf32, #tpu.memory_space<vmem>>, vector<2x32x128xf32>
    "tpu.trace_start"() <{level = 10 : i32, message = "ami,aig->amg"}> : () -> ()
    %cst = arith.constant dense<0.000000e+00> : vector<2x8x128xf32>
    %2 = tpu.matmul %0, %1, %cst {dimension_numbers = #tpu.dot_dimension_numbers<[2], [1], [1], [2], [0, 0, 0, 1, 1, 2], [0], [0]>} : vector<2x8x32xf32>, vector<2x32x128xf32>, vector<2x8x128xf32> -> vector<2x8x128xf32>
    "tpu.trace_stop"() : () -> ()
    %3 = vector.extract_strided_slice %2 {offsets = [0, 0, 0], sizes = [2, 2, 128], strides = [1, 1, 1]} : vector<2x8x128xf32> to vector<2x2x128xf32>
    %c0_5 = arith.constant 0 : index
    %c0_6 = arith.constant 0 : index
    %c0_7 = arith.constant 0 : index
    %c0_8 = arith.constant 0 : index
    %4 = vector.load %arg7[%c0_5, %c0_6, %c0_7, %c0_8] : memref<4x2x2x128xf32, #tpu.memory_space<vmem>>, vector<1x2x2x128xf32>
    %5 = vector.shape_cast %4 : vector<1x2x2x128xf32> to vector<2x2x128xf32>
    %6 = vector.shape_cast %3 : vector<2x2x128xf32> to vector<1x2x2x128xf32>
    tpu.vector_store %arg7[%c0_5, %c0_6, %c0_7, %c0_8], %6 {strides = array<i32>} : memref<4x2x2x128xf32, #tpu.memory_space<vmem>>, vector<1x2x2x128xf32>,
    %7 = vector.extract_strided_slice %2 {offsets = [0, 2, 0], sizes = [2, 2, 128], strides = [1, 1, 1]} : vector<2x8x128xf32> to vector<2x2x128xf32>
    %c1 = arith.constant 1 : index
    %c0_9 = arith.constant 0 : index
    %c0_10 = arith.constant 0 : index
    %c0_11 = arith.constant 0 : index
    %8 = vector.load %arg7[%c1, %c0_9, %c0_10, %c0_11] : memref<4x2x2x128xf32, #tpu.memory_space<vmem>>, vector<1x2x2x128xf32>
    %9 = vector.shape_cast %8 : vector<1x2x2x128xf32> to vector<2x2x128xf32>
    %10 = vector.shape_cast %7 : vector<2x2x128xf32> to vector<1x2x2x128xf32>
    tpu.vector_store %arg7[%c1, %c0_9, %c0_10, %c0_11], %10 {strides = array<i32>} : memref<4x2x2x128xf32, #tpu.memory_space<vmem>>, vector<1x2x2x128xf32>,
    %11 = vector.extract_strided_slice %2 {offsets = [0, 4, 0], sizes = [2, 2, 128], strides = [1, 1, 1]} : vector<2x8x128xf32> to vector<2x2x128xf32>
    %c2 = arith.constant 2 : index
    %c0_12 = arith.constant 0 : index
    %c0_13 = arith.constant 0 : index
    %c0_14 = arith.constant 0 : index
    %12 = vector.load %arg7[%c2, %c0_12, %c0_13, %c0_14] : memref<4x2x2x128xf32, #tpu.memory_space<vmem>>, vector<1x2x2x128xf32>
    %13 = vector.shape_cast %12 : vector<1x2x2x128xf32> to vector<2x2x128xf32>
    %14 = vector.shape_cast %11 : vector<2x2x128xf32> to vector<1x2x2x128xf32>
    tpu.vector_store %arg7[%c2, %c0_12, %c0_13, %c0_14], %14 {strides = array<i32>} : memref<4x2x2x128xf32, #tpu.memory_space<vmem>>, vector<1x2x2x128xf32>,
    %15 = vector.extract_strided_slice %2 {offsets = [0, 6, 0], sizes = [2, 2, 128], strides = [1, 1, 1]} : vector<2x8x128xf32> to vector<2x2x128xf32>
    %c3 = arith.constant 3 : index
    %c0_15 = arith.constant 0 : index
    %c0_16 = arith.constant 0 : index
    %c0_17 = arith.constant 0 : index
    %16 = vector.load %arg7[%c3, %c0_15, %c0_16, %c0_17] : memref<4x2x2x128xf32, #tpu.memory_space<vmem>>, vector<1x2x2x128xf32>
    %17 = vector.shape_cast %16 : vector<1x2x2x128xf32> to vector<2x2x128xf32>
    %18 = vector.shape_cast %15 : vector<2x2x128xf32> to vector<1x2x2x128xf32>
    tpu.vector_store %arg7[%c3, %c0_15, %c0_16, %c0_17], %18 {strides = array<i32>} : memref<4x2x2x128xf32, #tpu.memory_space<vmem>>, vector<1x2x2x128xf32>,
    %cst_18 = arith.constant 0.000000e+00 : f32
    %19 = vector.broadcast %cst_18 : f32 to vector<2x2x32xf32>
    %cst_19 = arith.constant 0.000000e+00 : f32
    %20 = vector.broadcast %cst_19 : f32 to vector<2x2x32xf32>
    %c0_i32 = arith.constant 0 : i32
    %c3_i32 = arith.constant 3 : i32
    %21 = arith.addi %c0_i32, %c3_i32 : i32
    %c1_i32 = arith.constant 1 : i32
    %22:2 = scf.for %arg8 = %c0_i32 to %21 step %c1_i32 iter_args(%arg9 = %19, %arg10 = %20) -> (vector<2x2x32xf32>, vector<2x2x32xf32>)  : i32 {
      %54 = arith.index_cast %arg8 : i32 to index
      %c0_40 = arith.constant 0 : index
      %c0_41 = arith.constant 0 : index
      %c0_42 = arith.constant 0 : index
      %55 = vector.load %arg7[%54, %c0_40, %c0_41, %c0_42] : memref<4x2x2x128xf32, #tpu.memory_space<vmem>>, vector<1x2x2x128xf32>
      %56 = vector.shape_cast %55 : vector<1x2x2x128xf32> to vector<2x2x128xf32>
      %c0_43 = arith.constant 0 : index
      %c0_44 = arith.constant 0 : index
      %c0_45 = arith.constant 0 : index
      %57 = vector.load %arg3[%c0_43, %c0_44, %c0_45] : memref<2x32x128xf32, #tpu.memory_space<vmem>>, vector<2x32x128xf32>
      "tpu.trace_start"() <{level = 10 : i32, message = "abh,ahg->abg"}> : () -> ()
      %cst_46 = arith.constant dense<0.000000e+00> : vector<2x2x128xf32>
      %58 = tpu.matmul %arg9, %57, %cst_46 {dimension_numbers = #tpu.dot_dimension_numbers<[2], [1], [1], [2], [0, 0, 0, 1, 1, 2], [0], [0]>} : vector<2x2x32xf32>, vector<2x32x128xf32>, vector<2x2x128xf32> -> vector<2x2x128xf32>
      "tpu.trace_stop"() : () -> ()
      %59 = arith.addf %56, %58 : vector<2x2x128xf32>
      %c0_47 = arith.constant 0 : index
      %c0_48 = arith.constant 0 : index
      %c0_49 = arith.constant 0 : index
      %60 = vector.load %arg5[%c0_47, %c0_48, %c0_49] : memref<2x1x128xf32, #tpu.memory_space<vmem>>, vector<2x1x128xf32>
      %61 = vector.broadcast %60 : vector<2x1x128xf32> to vector<2x2x128xf32>
      %62 = arith.addf %59, %61 : vector<2x2x128xf32>
      %63 = arith.negf %62 : vector<2x2x128xf32>
      %64 = math.exp %63 : vector<2x2x128xf32>
      %cst_50 = arith.constant 1.000000e+00 : f32
      %65 = vector.broadcast %cst_50 : f32 to vector<2x2x128xf32>
      %66 = arith.addf %65, %64 : vector<2x2x128xf32>
      %67 = arith.divf %65, %66 : vector<2x2x128xf32>
      %68 = vector.extract_strided_slice %67 {offsets = [0, 0, 0], sizes = [2, 2, 32], strides = [1, 1, 1]} : vector<2x2x128xf32> to vector<2x2x32xf32>
      %69 = vector.extract_strided_slice %67 {offsets = [0, 0, 32], sizes = [2, 2, 32], strides = [1, 1, 1]} : vector<2x2x128xf32> to vector<2x2x32xf32>
      %70 = vector.extract_strided_slice %67 {offsets = [0, 0, 64], sizes = [2, 2, 32], strides = [1, 1, 1]} : vector<2x2x128xf32> to vector<2x2x32xf32>
      %cst_51 = arith.constant 2.000000e+00 : f32
      %71 = vector.broadcast %cst_51 : f32 to vector<2x2x32xf32>
      %72 = arith.mulf %71, %70 : vector<2x2x32xf32>
      %cst_52 = arith.constant 1.000000e+00 : f32
      %73 = vector.broadcast %cst_52 : f32 to vector<2x2x32xf32>
      %74 = arith.subf %72, %73 : vector<2x2x32xf32>
      %75 = vector.extract_strided_slice %67 {offsets = [0, 0, 96], sizes = [2, 2, 32], strides = [1, 1, 1]} : vector<2x2x128xf32> to vector<2x2x32xf32>
      %76 = arith.mulf %69, %arg10 : vector<2x2x32xf32>
      %77 = arith.mulf %68, %74 : vector<2x2x32xf32>
      %78 = arith.addf %76, %77 : vector<2x2x32xf32>
      %79 = math.tanh %78 : vector<2x2x32xf32>
      %80 = arith.mulf %75, %79 : vector<2x2x32xf32>
      %c0_53 = arith.constant 0 : index
      %c0_54 = arith.constant 0 : index
      %c0_55 = arith.constant 0 : index
      %81 = vector.load %arg4[%c0_53, %c0_54, %c0_55] : memref<2x32x128xf32, #tpu.memory_space<vmem>>, vector<2x32x128xf32>
      "tpu.trace_start"() <{level = 10 : i32, message = "abh,ahg->abg"}> : () -> ()
      %cst_56 = arith.constant dense<0.000000e+00> : vector<2x2x128xf32>
      %82 = tpu.matmul %80, %81, %cst_56 {dimension_numbers = #tpu.dot_dimension_numbers<[2], [1], [1], [2], [0, 0, 0, 1, 1, 2], [0], [0]>} : vector<2x2x32xf32>, vector<2x32x128xf32>, vector<2x2x128xf32> -> vector<2x2x128xf32>
      "tpu.trace_stop"() : () -> ()
      %c0_57 = arith.constant 0 : index
      %c0_58 = arith.constant 0 : index
      %c0_59 = arith.constant 0 : index
      %83 = vector.load %arg5[%c0_57, %c0_58, %c0_59] : memref<2x1x128xf32, #tpu.memory_space<vmem>>, vector<2x1x128xf32>
      %84 = vector.broadcast %83 : vector<2x1x128xf32> to vector<2x2x128xf32>
      %85 = arith.addf %82, %84 : vector<2x2x128xf32>
      %86 = arith.negf %85 : vector<2x2x128xf32>
      %87 = math.exp %86 : vector<2x2x128xf32>
      %cst_60 = arith.constant 1.000000e+00 : f32
      %88 = vector.broadcast %cst_60 : f32 to vector<2x2x128xf32>
      %89 = arith.addf %88, %87 : vector<2x2x128xf32>
      %90 = arith.divf %88, %89 : vector<2x2x128xf32>
      %91 = vector.extract_strided_slice %90 {offsets = [0, 0, 0], sizes = [2, 2, 32], strides = [1, 1, 1]} : vector<2x2x128xf32> to vector<2x2x32xf32>
      %92 = vector.extract_strided_slice %90 {offsets = [0, 0, 32], sizes = [2, 2, 32], strides = [1, 1, 1]} : vector<2x2x128xf32> to vector<2x2x32xf32>
      %93 = vector.extract_strided_slice %90 {offsets = [0, 0, 64], sizes = [2, 2, 32], strides = [1, 1, 1]} : vector<2x2x128xf32> to vector<2x2x32xf32>
      %cst_61 = arith.constant 2.000000e+00 : f32
      %94 = vector.broadcast %cst_61 : f32 to vector<2x2x32xf32>
      %95 = arith.mulf %94, %93 : vector<2x2x32xf32>
      %cst_62 = arith.constant 1.000000e+00 : f32
      %96 = vector.broadcast %cst_62 : f32 to vector<2x2x32xf32>
      %97 = arith.subf %95, %96 : vector<2x2x32xf32>
      %98 = vector.extract_strided_slice %90 {offsets = [0, 0, 96], sizes = [2, 2, 32], strides = [1, 1, 1]} : vector<2x2x128xf32> to vector<2x2x32xf32>
      %99 = arith.mulf %92, %78 : vector<2x2x32xf32>
      %100 = arith.mulf %91, %97 : vector<2x2x32xf32>
      %101 = arith.addf %99, %100 : vector<2x2x32xf32>
      %102 = math.tanh %101 : vector<2x2x32xf32>
      %103 = arith.mulf %98, %102 : vector<2x2x32xf32>
      %104 = tpu.concatenate %80, %103 in 2 : vector<2x2x32xf32>, vector<2x2x32xf32> -> vector<2x2x64xf32>
      %105 = arith.index_cast %arg8 : i32 to index
      %c0_63 = arith.constant 0 : index
      %c0_64 = arith.constant 0 : index
      %c0_65 = arith.constant 0 : index
      %106 = vector.load %arg6[%105, %c0_63, %c0_64, %c0_65] : memref<4x2x2x64xf32, #tpu.memory_space<vmem>>, vector<1x2x2x64xf32>
      %107 = vector.shape_cast %106 : vector<1x2x2x64xf32> to vector<2x2x64xf32>
      %108 = vector.shape_cast %104 : vector<2x2x64xf32> to vector<1x2x2x64xf32>
      tpu.vector_store %arg6[%105, %c0_63, %c0_64, %c0_65], %108 {strides = array<i32>} : memref<4x2x2x64xf32, #tpu.memory_space<vmem>>, vector<1x2x2x64xf32>,
      scf.yield %103, %101 : vector<2x2x32xf32>, vector<2x2x32xf32>
    }
    %c3_i32_20 = arith.constant 3 : i32
    %c3_21 = arith.constant 3 : index
    %c0_22 = arith.constant 0 : index
    %c0_23 = arith.constant 0 : index
    %c0_24 = arith.constant 0 : index
    %23 = vector.load %arg7[%c3_21, %c0_22, %c0_23, %c0_24] : memref<4x2x2x128xf32, #tpu.memory_space<vmem>>, vector<1x2x2x128xf32>
    %24 = vector.shape_cast %23 : vector<1x2x2x128xf32> to vector<2x2x128xf32>
    %c0_25 = arith.constant 0 : index
    %c0_26 = arith.constant 0 : index
    %c0_27 = arith.constant 0 : index
    %25 = vector.load %arg3[%c0_25, %c0_26, %c0_27] : memref<2x32x128xf32, #tpu.memory_space<vmem>>, vector<2x32x128xf32>
    "tpu.trace_start"() <{level = 10 : i32, message = "abh,ahg->abg"}> : () -> ()
    %cst_28 = arith.constant dense<0.000000e+00> : vector<2x2x128xf32>
    %26 = tpu.matmul %22#0, %25, %cst_28 {dimension_numbers = #tpu.dot_dimension_numbers<[2], [1], [1], [2], [0, 0, 0, 1, 1, 2], [0], [0]>} : vector<2x2x32xf32>, vector<2x32x128xf32>, vector<2x2x128xf32> -> vector<2x2x128xf32>
    "tpu.trace_stop"() : () -> ()
    %27 = arith.addf %24, %26 : vector<2x2x128xf32>
    %c0_29 = arith.constant 0 : index
    %c0_30 = arith.constant 0 : index
    %c0_31 = arith.constant 0 : index
    %28 = vector.load %arg5[%c0_29, %c0_30, %c0_31] : memref<2x1x128xf32, #tpu.memory_space<vmem>>, vector<2x1x128xf32>
    %29 = vector.broadcast %28 : vector<2x1x128xf32> to vector<2x2x128xf32>
    %30 = arith.addf %27, %29 : vector<2x2x128xf32>
    %31 = arith.negf %30 : vector<2x2x128xf32>
    %32 = math.exp %31 : vector<2x2x128xf32>
    %cst_32 = arith.constant 1.000000e+00 : f32
    %33 = vector.broadcast %cst_32 : f32 to vector<2x2x128xf32>
    %34 = arith.addf %33, %32 : vector<2x2x128xf32>
    %35 = arith.divf %33, %34 : vector<2x2x128xf32>
    %36 = vector.extract_strided_slice %35 {offsets = [0, 0, 0], sizes = [2, 2, 32], strides = [1, 1, 1]} : vector<2x2x128xf32> to vector<2x2x32xf32>
    %37 = vector.extract_strided_slice %35 {offsets = [0, 0, 32], sizes = [2, 2, 32], strides = [1, 1, 1]} : vector<2x2x128xf32> to vector<2x2x32xf32>
    %38 = vector.extract_strided_slice %35 {offsets = [0, 0, 64], sizes = [2, 2, 32], strides = [1, 1, 1]} : vector<2x2x128xf32> to vector<2x2x32xf32>
    %cst_33 = arith.constant 2.000000e+00 : f32
    %39 = vector.broadcast %cst_33 : f32 to vector<2x2x32xf32>
    %40 = arith.mulf %39, %38 : vector<2x2x32xf32>
    %cst_34 = arith.constant 1.000000e+00 : f32
    %41 = vector.broadcast %cst_34 : f32 to vector<2x2x32xf32>
    %42 = arith.subf %40, %41 : vector<2x2x32xf32>
    %43 = vector.extract_strided_slice %35 {offsets = [0, 0, 96], sizes = [2, 2, 32], strides = [1, 1, 1]} : vector<2x2x128xf32> to vector<2x2x32xf32>
    %44 = arith.mulf %37, %22#1 : vector<2x2x32xf32>
    %45 = arith.mulf %36, %42 : vector<2x2x32xf32>
    %46 = arith.addf %44, %45 : vector<2x2x32xf32>
    %47 = math.tanh %46 : vector<2x2x32xf32>
    %48 = arith.mulf %43, %47 : vector<2x2x32xf32>
    %cst_35 = arith.constant 0.000000e+00 : f32
    %49 = vector.broadcast %cst_35 : f32 to vector<2x2x32xf32>
    %50 = tpu.concatenate %48, %49 in 2 : vector<2x2x32xf32>, vector<2x2x32xf32> -> vector<2x2x64xf32>
    %c3_36 = arith.constant 3 : index
    %c0_37 = arith.constant 0 : index
    %c0_38 = arith.constant 0 : index
    %c0_39 = arith.constant 0 : index
    %51 = vector.load %arg6[%c3_36, %c0_37, %c0_38, %c0_39] : memref<4x2x2x64xf32, #tpu.memory_space<vmem>>, vector<1x2x2x64xf32>
    %52 = vector.shape_cast %51 : vector<1x2x2x64xf32> to vector<2x2x64xf32>
    %53 = vector.shape_cast %50 : vector<2x2x64xf32> to vector<1x2x2x64xf32>
    tpu.vector_store %arg6[%c3_36, %c0_37, %c0_38, %c0_39], %53 {strides = array<i32>} : memref<4x2x2x64xf32, #tpu.memory_space<vmem>>, vector<1x2x2x64xf32>,
    return
  }
  func.func @transform_0(%arg0: i32) -> (i32, i32, i32) {
    %c0_i32 = arith.constant 0 : i32
    %c0_i32_0 = arith.constant 0 : i32
    %c0_i32_1 = arith.constant 0 : i32
    return %arg0, %c0_i32, %c0_i32_0 : i32, i32, i32
  }
  func.func @transform_1(%arg0: i32) -> (i32, i32, i32) {
    %c0_i32 = arith.constant 0 : i32
    %c0_i32_0 = arith.constant 0 : i32
    %c0_i32_1 = arith.constant 0 : i32
    return %arg0, %c0_i32, %c0_i32_0 : i32, i32, i32
  }
  func.func @transform_2(%arg0: i32) -> (i32, i32, i32) {
    %c0_i32 = arith.constant 0 : i32
    %c0_i32_0 = arith.constant 0 : i32
    %c0_i32_1 = arith.constant 0 : i32
    return %arg0, %c0_i32, %c0_i32_0 : i32, i32, i32
  }
  func.func @transform_3(%arg0: i32) -> (i32, i32, i32) {
    %c0_i32 = arith.constant 0 : i32
    %c0_i32_0 = arith.constant 0 : i32
    %c0_i32_1 = arith.constant 0 : i32
    return %arg0, %c0_i32, %c0_i32_0 : i32, i32, i32
  }
  func.func @transform_4(%arg0: i32) -> (i32, i32, i32) {
    %c0_i32 = arith.constant 0 : i32
    %c0_i32_0 = arith.constant 0 : i32
    %c0_i32_1 = arith.constant 0 : i32
    return %arg0, %c0_i32, %c0_i32_0 : i32, i32, i32
  }
  func.func @transform_5(%arg0: i32) -> (i32, i32, i32, i32) {
    %c0_i32 = arith.constant 0 : i32
    %c0_i32_0 = arith.constant 0 : i32
    %c0_i32_1 = arith.constant 0 : i32
    %c0_i32_2 = arith.constant 0 : i32
    return %c0_i32, %arg0, %c0_i32_0, %c0_i32_1 : i32, i32, i32, i32
  }
}

</mosaic_0001>

<llo_original>
// kernel: tpu_custom_call.1
$region0: #{tpu_custom_call.1}
  #allocation0 [shape = 'u32[]', space=smem, size = 0x4, offset = 0x4, fixed_abs, tag = 'smem constant byte address 0x4 - core index']
  #allocation1 [shape = 'u32[144,128]{1,0:T(1,128)}', space=vmem, size = 0x12000, scoped, tag = 'internal scratch']
  #allocation2 [shape = 'f32[4,2,2,128]{3,2,1,0:T(2,128)}', space=vmem, size = 0x2000, scoped, tag = 'scratch operand']
  #allocation12 [shape = 's32[]', space=sflag, size = 0x4, offset = 0, fixed_abs, tag = 'sflag constant byte address 0x0 - dummy sync flag']
  %s0 = inlined_call_operand.hbm [shape: f32[4,8,32], index: 0, kind: input, shape index: {}]
  %s1 = inlined_call_operand.hbm [shape: f32[4,32,128], index: 1, kind: input, shape index: {}]
  %s2 = inlined_call_operand.hbm [shape: f32[4,32,128], index: 2, kind: input, shape index: {}]
  %s3 = inlined_call_operand.hbm [shape: f32[4,32,128], index: 3, kind: input, shape index: {}]
  %s4 = inlined_call_operand.vmem [shape: f32[4,1,128], index: 4, kind: input, shape index: {}]
  %s5 = inlined_call_operand.hbm [shape: f32[4,4,2,64], index: 5, kind: output, shape index: {}]
  %s6 = sld [smem:[#allocation0]]
  $region76: #{tpu_custom_call.1} parent=0
    _
  %s8 = ssub.s32 1, %s6
  %s9 = scalar_select 0, %s8, %s6
  $region1: #{tpu_custom_call.1} parent=0
    #allocation3 [shape = 'u8[16384]{0}', space=vmem, size = 0x4000, scoped, tag = 'input window, operand 0']
    #allocation4 [shape = 's32[2]{0}', space=sflag, size = 0x8, scoped, tag = 'scoped memory for tpu_custom_call.1']
    #allocation5 [shape = 's32[2]{0}', space=sflag, size = 0x8, scoped, tag = 'scoped memory for tpu_custom_call.1']
    #allocation6 [shape = 'u8[65536]{0}', space=vmem, size = 0x10000, scoped, tag = 'input window, operand 1']
    #allocation7 [shape = 's32[2]{0}', space=sflag, size = 0x8, scoped, tag = 'scoped memory for tpu_custom_call.1']
    #allocation8 [shape = 'u8[65536]{0}', space=vmem, size = 0x10000, scoped, tag = 'input window, operand 2']
    #allocation9 [shape = 'u8[65536]{0}', space=vmem, size = 0x10000, scoped, tag = 'input window, operand 3']
    #allocation10 [shape = 's32[2]{0}', space=sflag, size = 0x8, scoped, tag = 'scoped memory for tpu_custom_call.1']
    #allocation11 [shape = 'u8[16384]{0}', space=vmem, size = 0x4000, scoped, tag = 'output window, operand 0']
    %10 = vsyncpa [#allocation4], 0
    %s11 = scalar_lea.sflag [#allocation4], 1
    %12 = vsyncpa %s11, 0
    %13 = vsyncpa [#allocation7], 0
    %s14 = scalar_lea.sflag [#allocation7], 1
    %15 = vsyncpa %s14, 0
    %16 = vsyncpa [#allocation10], 0
    %s17 = scalar_lea.sflag [#allocation10], 1
    %18 = vsyncpa %s17, 0
    %19 = vsyncpa [#allocation5], 0
    %s20 = scalar_lea.sflag [#allocation5], 1
    %21 = vsyncpa %s20, 0
    loop: start=0, step=1, limit=4
    $region2: #{tpu_custom_call.1} parent=1 // loop_pre_header
      _
    $region3: #{tpu_custom_call.1} parent=1 // loop_header
      %s23 = sphi 0, %s27
      %p24 = scmp.ge.s32.totalorder %s23, 4
      %s33 = sphi 0, %s35
      %s36 = sphi 0, %s33
      %s37 = sphi 0, %s36
      %s53 = sphi 0, %s37
      %s59 = sphi 0, %s61
      %s62 = sphi 0, %s59
      %s63 = sphi 0, %s62
      %s79 = sphi 0, %s63
      %s85 = sphi 0, %s87
      %s88 = sphi 0, %s85
      %s89 = sphi 0, %s88
      %s105 = sphi 0, %s89
      %s111 = sphi 0, %s113
      %s114 = sphi 0, %s111
      %s115 = sphi 0, %s114
      %s131 = sphi 0, %s115
      %s137 = sphi 0, %s139
      %s140 = sphi 0, %s137
      %s141 = sphi 0, %s140
      %s157 = sphi 0, %s141
      %s163 = sphi 0, %s165
      %s166 = sphi 0, %s163
      %s167 = sphi 0, %s166
      %s183 = sphi 0, %s167
    $region4: #{tpu_custom_call.1} parent=1 // loop_header_branch
      %26 = sbr.rel (%p24) target = $region8
    $region5: #{tpu_custom_call.1} parent=1 // loop_body
      %s28 = ssub.s32 %s23, 1
      %s29 = ssub.s32 %s23, 2
      %s30 = sadd.s32 %s23, 1
      %s31 = ssub.s32 %s23, %s30
      %p32 = scmp.eq.s32.totalorder %s31, 0
      %s34 = sadd.s32 %s33, 1
      %s35 = scalar_select %p32, %s33, %s34
      %p38 = pneg %p32
      %p39 = scmp.eq.s32.totalorder %s23, 1
      %p40 = por %p38, %p39
      %p41 = scmp.ne.s32.totalorder %s33, %s36
      %p42 = scmp.eq.s32.totalorder %s23, 0
      %p43 = por %p41, %p42
      %p44 = scmp.ne.s32.totalorder %s33, %s36
      %p45 = scmp.eq.s32.totalorder %s28, 1
      %p46 = por %p44, %p45
      %p47 = scmp.ne.s32.totalorder %s36, %s37
      %p48 = scmp.eq.s32.totalorder %s28, 0
      %p49 = por %p47, %p48
      %p50 = scmp.ne.s32.totalorder %s36, %s37
      %p51 = scmp.eq.s32.totalorder %s29, 1
      %p52 = por %p50, %p51
      %p54 = scmp.ne.s32.totalorder %s37, %s53
      %p55 = scmp.eq.s32.totalorder %s29, 0
      %p56 = por %p54, %p55
      %s57 = ssub.s32 %s23, %s30
      %p58 = scmp.eq.s32.totalorder %s57, 0
      %s60 = sadd.s32 %s59, 1
      %s61 = scalar_select %p58, %s59, %s60
      %p64 = pneg %p58
      %p65 = scmp.eq.s32.totalorder %s23, 1
      %p66 = por %p64, %p65
      %p67 = scmp.ne.s32.totalorder %s59, %s62
      %p68 = scmp.eq.s32.totalorder %s23, 0
      %p69 = por %p67, %p68
      %p70 = scmp.ne.s32.totalorder %s59, %s62
      %p71 = scmp.eq.s32.totalorder %s28, 1
      %p72 = por %p70, %p71
      %p73 = scmp.ne.s32.totalorder %s62, %s63
      %p74 = scmp.eq.s32.totalorder %s28, 0
      %p75 = por %p73, %p74
      %p76 = scmp.ne.s32.totalorder %s62, %s63
      %p77 = scmp.eq.s32.totalorder %s29, 1
      %p78 = por %p76, %p77
      %p80 = scmp.ne.s32.totalorder %s63, %s79
      %p81 = scmp.eq.s32.totalorder %s29, 0
      %p82 = por %p80, %p81
      %s83 = ssub.s32 %s23, %s30
      %p84 = scmp.eq.s32.totalorder %s83, 0
      %s86 = sadd.s32 %s85, 1
      %s87 = scalar_select %p84, %s85, %s86
      %p90 = pneg %p84
      %p91 = scmp.eq.s32.totalorder %s23, 1
      %p92 = por %p90, %p91
      %p93 = scmp.ne.s32.totalorder %s85, %s88
      %p94 = scmp.eq.s32.totalorder %s23, 0
      %p95 = por %p93, %p94
      %p96 = scmp.ne.s32.totalorder %s85, %s88
      %p97 = scmp.eq.s32.totalorder %s28, 1
      %p98 = por %p96, %p97
      %p99 = scmp.ne.s32.totalorder %s88, %s89
      %p100 = scmp.eq.s32.totalorder %s28, 0
      %p101 = por %p99, %p100
      %p102 = scmp.ne.s32.totalorder %s88, %s89
      %p103 = scmp.eq.s32.totalorder %s29, 1
      %p104 = por %p102, %p103
      %p106 = scmp.ne.s32.totalorder %s89, %s105
      %p107 = scmp.eq.s32.totalorder %s29, 0
      %p108 = por %p106, %p107
      %s109 = ssub.s32 %s23, %s30
      %p110 = scmp.eq.s32.totalorder %s109, 0
      %s112 = sadd.s32 %s111, 1
      %s113 = scalar_select %p110, %s111, %s112
      %p116 = pneg %p110
      %p117 = scmp.eq.s32.totalorder %s23, 1
      %p118 = por %p116, %p117
      %p119 = scmp.ne.s32.totalorder %s111, %s114
      %p120 = scmp.eq.s32.totalorder %s23, 0
      %p121 = por %p119, %p120
      %p122 = scmp.ne.s32.totalorder %s111, %s114
      %p123 = scmp.eq.s32.totalorder %s28, 1
      %p124 = por %p122, %p123
      %p125 = scmp.ne.s32.totalorder %s114, %s115
      %p126 = scmp.eq.s32.totalorder %s28, 0
      %p127 = por %p125, %p126
      %p128 = scmp.ne.s32.totalorder %s114, %s115
      %p129 = scmp.eq.s32.totalorder %s29, 1
      %p130 = por %p128, %p129
      %p132 = scmp.ne.s32.totalorder %s115, %s131
      %p133 = scmp.eq.s32.totalorder %s29, 0
      %p134 = por %p132, %p133
      %s135 = ssub.s32 %s23, %s30
      %p136 = scmp.eq.s32.totalorder %s135, 0
      %s138 = sadd.s32 %s137, 1
      %s139 = scalar_select %p136, %s137, %s138
      %p142 = pneg %p136
      %p143 = scmp.eq.s32.totalorder %s23, 1
      %p144 = por %p142, %p143
      %p145 = scmp.ne.s32.totalorder %s137, %s140
      %p146 = scmp.eq.s32.totalorder %s23, 0
      %p147 = por %p145, %p146
      %p148 = scmp.ne.s32.totalorder %s137, %s140
      %p149 = scmp.eq.s32.totalorder %s28, 1
      %p150 = por %p148, %p149
      %p151 = scmp.ne.s32.totalorder %s140, %s141
      %p152 = scmp.eq.s32.totalorder %s28, 0
      %p153 = por %p151, %p152
      %p154 = scmp.ne.s32.totalorder %s140, %s141
      %p155 = scmp.eq.s32.totalorder %s29, 1
      %p156 = por %p154, %p155
      %p158 = scmp.ne.s32.totalorder %s141, %s157
      %p159 = scmp.eq.s32.totalorder %s29, 0
      %p160 = por %p158, %p159
      %s161 = ssub.s32 %s23, %s30
      %p162 = scmp.eq.s32.totalorder %s161, 0
      %s164 = sadd.s32 %s163, 1
      %s165 = scalar_select %p162, %s163, %s164
      %p168 = pneg %p162
      %p169 = scmp.eq.s32.totalorder %s23, 1
      %p170 = por %p168, %p169
      %p171 = scmp.ne.s32.totalorder %s163, %s166
      %p172 = scmp.eq.s32.totalorder %s23, 0
      %p173 = por %p171, %p172
      %p174 = scmp.ne.s32.totalorder %s163, %s166
      %p175 = scmp.eq.s32.totalorder %s28, 1
      %p176 = por %p174, %p175
      %p177 = scmp.ne.s32.totalorder %s166, %s167
      %p178 = scmp.eq.s32.totalorder %s28, 0
      %p179 = por %p177, %p178
      %p180 = scmp.ne.s32.totalorder %s166, %s167
      %p181 = scmp.eq.s32.totalorder %s29, 1
      %p182 = por %p180, %p181
      %p184 = scmp.ne.s32.totalorder %s167, %s183
      %p185 = scmp.eq.s32.totalorder %s29, 0
      %p186 = por %p184, %p185
      %p187 = scmp.le.s32.totalorder 1, %s23
      %p188 = scmp.lt.s32.totalorder %s23, 3
      %p189 = pnand %p187, %p188
      %p190 = pneg %p189
      // Predicated region
      $region9: #{tpu_custom_call.1} parent=5 // pred_check
        _
      $region10: #{tpu_custom_call.1} parent=5 // pred_check_branch
        %192 = sbr.rel (%p189) target = $region12
      $region11: #{tpu_custom_call.1} parent=5 // pred_region
        %s193 = ssub.s32 %s23, 1
      $region12: #{tpu_custom_call.1} parent=5 // pred_fallthru
        _
      %p194 = scmp.lt.s32.totalorder %s23, 2
      // Predicated region
      $region13: #{tpu_custom_call.1} parent=5 // pred_check
        %p195 = pneg %p194
      $region14: #{tpu_custom_call.1} parent=5 // pred_check_branch
        %197 = sbr.rel (%p195) target = $region16
      $region15: #{tpu_custom_call.1} parent=5 // pred_region
        // Predicated region
        $region17: #{tpu_custom_call.1} parent=15 // pred_check
          %p198 = pneg %p43
        $region18: #{tpu_custom_call.1} parent=15 // pred_check_branch
          %200 = sbr.rel (%p198) target = $region20
        $region19: #{tpu_custom_call.1} parent=15 // pred_region
          %s201 = sand.u32 %s33, 1
          %s202 = scalar_lea.sflag [#allocation4], %s201
          %s203 = sand.u32 %s33, 1
          %s204 = smul.addr %s203, 16
          %s205 = scalar_lea.vmem [#allocation3], %s204
          %s206 = smul.u32 2, %s23
          %s208 = ssub.s32 256, 256
          %209 = vsyncadd %s202, %s208
          %s210 = smul.addr %s206, 128
          %s211 = scalar_lea.hbm %s0, %s210
          %s212 = sshll.u32 %s205, 4
          %s213 = int_to_ptr.vmem [resolvable:$true] %s212
          %218 = dma.hbm_to_vmem [thread:$0]  %s211, 256, %s213, %s202, 128, 128, 8
        $region20: #{tpu_custom_call.1} parent=15 // pred_fallthru
          _
        // Predicated region
        $region21: #{tpu_custom_call.1} parent=15 // pred_check
          %p219 = pneg %p69
        $region22: #{tpu_custom_call.1} parent=15 // pred_check_branch
          %221 = sbr.rel (%p219) target = $region24
        $region23: #{tpu_custom_call.1} parent=15 // pred_region
          %s222 = sand.u32 %s23, 1
          %s223 = scalar_lea.sflag [#allocation7], %s222
          %s224 = sand.u32 %s59, 1
          %s225 = smul.addr %s224, 64
          %s226 = scalar_lea.vmem [#allocation6], %s225
          %s227 = smul.u32 2, %s23
          %s229 = ssub.s32 1024, 1024
          %230 = vsyncadd %s223, %s229
          %s231 = smul.addr %s227, 4
          %s232 = smul.addr %s231, 128
          %s233 = scalar_lea.hbm %s1, %s232
          %s234 = sshll.u32 %s226, 4
          %s235 = int_to_ptr.vmem [resolvable:$true] %s234
          %240 = dma.hbm_to_vmem [thread:$0]  %s233, 1024, %s235, %s223, 128, 128, 8
        $region24: #{tpu_custom_call.1} parent=15 // pred_fallthru
          _
        // Predicated region
        $region25: #{tpu_custom_call.1} parent=15 // pred_check
          %p241 = pneg %p95
        $region26: #{tpu_custom_call.1} parent=15 // pred_check_branch
          %243 = sbr.rel (%p241) target = $region28
        $region27: #{tpu_custom_call.1} parent=15 // pred_region
          %s244 = sand.u32 %s23, 1
          %s245 = scalar_lea.sflag [#allocation7], %s244
          %s246 = sand.u32 %s85, 1
          %s247 = smul.addr %s246, 64
          %s248 = scalar_lea.vmem [#allocation8], %s247
          %s249 = smul.u32 2, %s23
          %s251 = ssub.s32 1024, 1024
          %252 = vsyncadd %s245, %s251
          %s253 = smul.addr %s249, 4
          %s254 = smul.addr %s253, 128
          %s255 = scalar_lea.hbm %s2, %s254
          %s256 = sshll.u32 %s248, 4
          %s257 = int_to_ptr.vmem [resolvable:$true] %s256
          %262 = dma.hbm_to_vmem [thread:$0]  %s255, 1024, %s257, %s245, 128, 128, 8
        $region28: #{tpu_custom_call.1} parent=15 // pred_fallthru
          _
        // Predicated region
        $region29: #{tpu_custom_call.1} parent=15 // pred_check
          %p263 = pneg %p121
        $region30: #{tpu_custom_call.1} parent=15 // pred_check_branch
          %265 = sbr.rel (%p263) target = $region32
        $region31: #{tpu_custom_call.1} parent=15 // pred_region
          %s266 = sand.u32 %s111, 1
          %s267 = scalar_lea.sflag [#allocation10], %s266
          %s268 = sand.u32 %s111, 1
          %s269 = smul.addr %s268, 64
          %s270 = scalar_lea.vmem [#allocation9], %s269
          %s271 = smul.u32 2, %s23
          %s273 = ssub.s32 1024, 1024
          %274 = vsyncadd %s267, %s273
          %s275 = smul.addr %s271, 4
          %s276 = smul.addr %s275, 128
          %s277 = scalar_lea.hbm %s3, %s276
          %s278 = sshll.u32 %s270, 4
          %s279 = int_to_ptr.vmem [resolvable:$true] %s278
          %284 = dma.hbm_to_vmem [thread:$0]  %s277, 1024, %s279, %s267, 128, 128, 8
        $region32: #{tpu_custom_call.1} parent=15 // pred_fallthru
          _
        // Predicated region
        $region33: #{tpu_custom_call.1} parent=15 // pred_check
          %p285 = pneg %p147
        $region34: #{tpu_custom_call.1} parent=15 // pred_check_branch
          %287 = sbr.rel (%p285) target = $region36
        $region35: #{tpu_custom_call.1} parent=15 // pred_region
          %s288 = smul.u32 2, %s23
          %p289 = scmp.lt.s32.totalorder %s288, 3
          %s290 = scalar_select %p289, %s288, 3
          %s291 = scalar_lea.vmem %s4, %s290
          %s292 = smul.u32 2, %s23
        $region36: #{tpu_custom_call.1} parent=15 // pred_fallthru
          _
      $region16: #{tpu_custom_call.1} parent=5 // pred_fallthru
        _
      %p293 = scmp.le.s32.totalorder 1, %s23
      %p294 = scmp.lt.s32.totalorder %s23, 3
      %p295 = pnand %p293, %p294
      %p296 = pneg %p295
      // Predicated region
      $region37: #{tpu_custom_call.1} parent=5 // pred_check
        _
      $region38: #{tpu_custom_call.1} parent=5 // pred_check_branch
        %298 = sbr.rel (%p295) target = $region40
      $region39: #{tpu_custom_call.1} parent=5 // pred_region
        %s299 = ssub.s32 %s23, 1
        %s300 = sand.u32 %s36, 1
        %s301 = scalar_lea.sflag [#allocation4], %s300
        %s302 = sand.u32 %s36, 1
        %s303 = smul.addr %s302, 16
        %s304 = scalar_lea.vmem [#allocation3], %s303
        // Predicated region
        $region41: #{tpu_custom_call.1} parent=39 // pred_check
          %p305 = pneg %p49
        $region42: #{tpu_custom_call.1} parent=39 // pred_check_branch
          %307 = sbr.rel (%p305) target = $region44
        $region43: #{tpu_custom_call.1} parent=39 // pred_region
          %308 = dma.done %s301, 256
        $region44: #{tpu_custom_call.1} parent=39 // pred_fallthru
          _
        %s309 = sand.u32 %s28, 1
        %s310 = scalar_lea.sflag [#allocation7], %s309
        %s311 = sand.u32 %s62, 1
        %s312 = smul.addr %s311, 64
        %s313 = scalar_lea.vmem [#allocation6], %s312
        // Predicated region
        $region45: #{tpu_custom_call.1} parent=39 // pred_check
          %p314 = pneg %p75
        $region46: #{tpu_custom_call.1} parent=39 // pred_check_branch
          %316 = sbr.rel (%p314) target = $region48
        $region47: #{tpu_custom_call.1} parent=39 // pred_region
          %317 = dma.done %s310, 1024
        $region48: #{tpu_custom_call.1} parent=39 // pred_fallthru
          _
        %s318 = sand.u32 %s28, 1
        %s319 = scalar_lea.sflag [#allocation7], %s318
        %s320 = sand.u32 %s88, 1
        %s321 = smul.addr %s320, 64
        %s322 = scalar_lea.vmem [#allocation8], %s321
        // Predicated region
        $region49: #{tpu_custom_call.1} parent=39 // pred_check
          %p323 = pneg %p101
        $region50: #{tpu_custom_call.1} parent=39 // pred_check_branch
          %325 = sbr.rel (%p323) target = $region52
        $region51: #{tpu_custom_call.1} parent=39 // pred_region
          %326 = dma.done %s319, 1024
        $region52: #{tpu_custom_call.1} parent=39 // pred_fallthru
          _
        %s327 = sand.u32 %s114, 1
        %s328 = scalar_lea.sflag [#allocation10], %s327
        %s329 = sand.u32 %s114, 1
        %s330 = smul.addr %s329, 64
        %s331 = scalar_lea.vmem [#allocation9], %s330
        // Predicated region
        $region53: #{tpu_custom_call.1} parent=39 // pred_check
          %p332 = pneg %p127
        $region54: #{tpu_custom_call.1} parent=39 // pred_check_branch
          %334 = sbr.rel (%p332) target = $region56
        $region55: #{tpu_custom_call.1} parent=39 // pred_region
          %335 = dma.done %s328, 1024
        $region56: #{tpu_custom_call.1} parent=39 // pred_fallthru
          _
        %s336 = sand.u32 %s36, 1
        %s337 = scalar_lea.sflag [#allocation4], %s336
        %s338 = sand.u32 %s36, 1
        %s339 = smul.addr %s338, 16
        %s340 = scalar_lea.vmem [#allocation3], %s339
        %p341 = pneg %p49
        %p342 = pneg %p46
        %s343 = sand.u32 %s28, 1
        %s344 = scalar_lea.sflag [#allocation7], %s343
        %s345 = sand.u32 %s62, 1
        %s346 = smul.addr %s345, 64
        %s347 = scalar_lea.vmem [#allocation6], %s346
        %p348 = pneg %p75
        %p349 = pneg %p72
        %s350 = sand.u32 %s28, 1
        %s351 = scalar_lea.sflag [#allocation7], %s350
        %s352 = sand.u32 %s88, 1
        %s353 = smul.addr %s352, 64
        %s354 = scalar_lea.vmem [#allocation8], %s353
        %p355 = pneg %p101
        %p356 = pneg %p98
        %s357 = sand.u32 %s114, 1
        %s358 = scalar_lea.sflag [#allocation10], %s357
        %s359 = sand.u32 %s114, 1
        %s360 = smul.addr %s359, 64
        %s361 = scalar_lea.vmem [#allocation9], %s360
        %p362 = pneg %p127
        %p363 = pneg %p124
        %s364 = smul.u32 2, %s28
        %p365 = scmp.lt.s32.totalorder %s364, 3
        %s366 = scalar_select %p365, %s364, 3
        %s367 = scalar_lea.vmem %s4, %s366
        %p368 = pneg %p153
        %p369 = pneg %p150
        %p370 = pneg %p179
        %p371 = pneg %p176
        %s372 = sand.u32 %s166, 1
        %s373 = scalar_lea.sflag [#allocation5], %s372
        %s374 = sand.u32 %s166, 1
        %s375 = smul.addr %s374, 16
        %s376 = scalar_lea.vmem [#allocation11], %s375
        %s377 = smul.u32 2, %s28
        %s378 = smul.u32 2, %s28
        %s379 = smul.u32 2, %s28
        %s380 = smul.u32 2, %s28
        %s381 = smul.u32 2, %s28
        %p382 = scmp.lt.s32.totalorder %s381, 3
        %s383 = scalar_select %p382, %s381, 3
        %s384 = scalar_lea.vmem %s4, %s383
        %s385 = smul.u32 2, %s28
        %s386 = smul.u32 2, %s28
        %v387 = vld [vmem:[%s304] sm:$0xff]
        %v388 = vld [vmem:[%s304 + $0x8] sm:$0xff]
        %v389 = vld [vmem:[%s313] sm:$0xff]
        %v390 = vld [vmem:[%s313 + $0x8] sm:$0xff]
        %v391 = vld [vmem:[%s313 + $0x10] sm:$0xff]
        %v392 = vld [vmem:[%s313 + $0x18] sm:$0xff]
        %v393 = vld [vmem:[%s313 + $0x20] sm:$0xff]
        %v394 = vld [vmem:[%s313 + $0x28] sm:$0xff]
        %v395 = vld [vmem:[%s313 + $0x30] sm:$0xff]
        %v396 = vld [vmem:[%s313 + $0x38] sm:$0xff]
        %vm397 = vcmask 261120
        %v399 = vsel %vm397, %v387, 0
        %401 = vmatprep.subr.mxu0 0.0
        %402 = vmatpush1.msra.mxu0 %v389
        %403 = vmatprep.subr.mxu0 0.0
        %404 = vmatpush1.msra.mxu0 %v390
        %405 = vmatprep.subr.mxu0 0.0
        %406 = vmatpush1.msra.mxu0 %v391
        %407 = vmatprep.subr.mxu0 0.0
        %408 = vmatpush1.msra.mxu0 %v392
        %409 = vmatprep.subr.mxu0 0.0
        %410 = vmatpush1.msra.mxu0 0.0
        %411 = vmatprep.subr.mxu0 0.0
        %412 = vmatpush1.msra.mxu0 0.0
        %413 = vmatprep.subr.mxu0 0.0
        %414 = vmatpush1.msra.mxu0 0.0
        %415 = vmatprep.subr.mxu0 0.0
        %416 = vmatpush1.msra.mxu0 0.0
        %417 = vmatprep.subr.mxu0 0.0
        %418 = vmatpush1.msra.mxu0 0.0
        %419 = vmatprep.subr.mxu0 0.0
        %420 = vmatpush1.msra.mxu0 0.0
        %421 = vmatprep.subr.mxu0 0.0
        %422 = vmatpush1.msra.mxu0 0.0
        %423 = vmatprep.subr.mxu0 0.0
        %424 = vmatpush1.msra.mxu0 0.0
        %425 = vmatprep.subr.mxu0 0.0
        %426 = vmatpush1.msra.mxu0 0.0
        %427 = vmatprep.subr.mxu0 0.0
        %428 = vmatpush1.msra.mxu0 0.0
        %429 = vmatprep.subr.mxu0 0.0
        %430 = vmatpush1.msra.mxu0 0.0
        %431 = vmatprep.subr.mxu0 0.0
        %432 = vmatpush1.msra.mxu0 0.0
        %433 = vmatprep.subr.mxu0 0.0
        %434 = vmatpush1.msra.mxu0 0.0
        %435 = vmatprep.subr.mxu0 0.0
        %436 = vmatpush1.msra.mxu0 0.0
        %437 = vmatprep.subr.mxu0 0.0
        %438 = vmatpush1.msra.mxu0 0.0
        %439 = vmatprep.subr.mxu0 0.0
        %440 = vmatpush1.msra.mxu0 0.0
        %441 = vmatprep.subr.mxu0 0.0
        %442 = vmatpush1.msra.mxu0 0.0
        %443 = vmatprep.subr.mxu0 0.0
        %444 = vmatpush1.msra.mxu0 0.0
        %445 = vmatprep.subr.mxu0 0.0
        %446 = vmatpush1.msra.mxu0 0.0
        %447 = vmatprep.subr.mxu0 0.0
        %448 = vmatpush1.msra.mxu0 0.0
        %449 = vmatprep.subr.mxu0 0.0
        %450 = vmatpush1.msra.mxu0 0.0
        %451 = vmatprep.subr.mxu0 0.0
        %452 = vmatpush1.msra.mxu0 0.0
        %453 = vmatprep.subr.mxu0 0.0
        %454 = vmatpush1.msra.mxu0 0.0
        %455 = vmatprep.subr.mxu0 0.0
        %456 = vmatpush1.msra.mxu0 0.0
        %457 = vmatprep.subr.mxu0 0.0
        %458 = vmatpush1.msra.mxu0 0.0
        %459 = vmatprep.subr.mxu0 0.0
        %460 = vmatpush1.msra.mxu0 0.0
        %461 = vmatprep.subr.mxu0 0.0
        %462 = vmatpush1.msra.mxu0 0.0
        %463 = vmatprep.subr.mxu0 0.0
        %464 = vmatpush1.msra.mxu0 0.0
        %465 = vmatprep.mubr.f32.mxu0 0.0
        %466 = vmatmul.mubr.f32.gmra.mrb[0].mxu0 %v399
        %v467 = vpop.f32.mrb[0].mxu0
        %v468 = vadd.f32 0.0, %v467
        %v469 = vpop.f32.mrb[0].mxu0
        %470 = vdwg.mxu0
        %v472 = vsel %vm397, %v388, 0
        %474 = vmatprep.subr.mxu0 0.0
        %475 = vmatpush1.msra.mxu0 %v393
        %476 = vmatprep.subr.mxu0 0.0
        %477 = vmatpush1.msra.mxu0 %v394
        %478 = vmatprep.subr.mxu0 0.0
        %479 = vmatpush1.msra.mxu0 %v395
        %480 = vmatprep.subr.mxu0 0.0
        %481 = vmatpush1.msra.mxu0 %v396
        %482 = vmatprep.subr.mxu0 0.0
        %483 = vmatpush1.msra.mxu0 0.0
        %484 = vmatprep.subr.mxu0 0.0
        %485 = vmatpush1.msra.mxu0 0.0
        %486 = vmatprep.subr.mxu0 0.0
        %487 = vmatpush1.msra.mxu0 0.0
        %488 = vmatprep.subr.mxu0 0.0
        %489 = vmatpush1.msra.mxu0 0.0
        %490 = vmatprep.subr.mxu0 0.0
        %491 = vmatpush1.msra.mxu0 0.0
        %492 = vmatprep.subr.mxu0 0.0
        %493 = vmatpush1.msra.mxu0 0.0
        %494 = vmatprep.subr.mxu0 0.0
        %495 = vmatpush1.msra.mxu0 0.0
        %496 = vmatprep.subr.mxu0 0.0
        %497 = vmatpush1.msra.mxu0 0.0
        %498 = vmatprep.subr.mxu0 0.0
        %499 = vmatpush1.msra.mxu0 0.0
        %500 = vmatprep.subr.mxu0 0.0
        %501 = vmatpush1.msra.mxu0 0.0
        %502 = vmatprep.subr.mxu0 0.0
        %503 = vmatpush1.msra.mxu0 0.0
        %504 = vmatprep.subr.mxu0 0.0
        %505 = vmatpush1.msra.mxu0 0.0
        %506 = vmatprep.subr.mxu0 0.0
        %507 = vmatpush1.msra.mxu0 0.0
        %508 = vmatprep.subr.mxu0 0.0
        %509 = vmatpush1.msra.mxu0 0.0
        %510 = vmatprep.subr.mxu0 0.0
        %511 = vmatpush1.msra.mxu0 0.0
        %512 = vmatprep.subr.mxu0 0.0
        %513 = vmatpush1.msra.mxu0 0.0
        %514 = vmatprep.subr.mxu0 0.0
        %515 = vmatpush1.msra.mxu0 0.0
        %516 = vmatprep.subr.mxu0 0.0
        %517 = vmatpush1.msra.mxu0 0.0
        %518 = vmatprep.subr.mxu0 0.0
        %519 = vmatpush1.msra.mxu0 0.0
        %520 = vmatprep.subr.mxu0 0.0
        %521 = vmatpush1.msra.mxu0 0.0
        %522 = vmatprep.subr.mxu0 0.0
        %523 = vmatpush1.msra.mxu0 0.0
        %524 = vmatprep.subr.mxu0 0.0
        %525 = vmatpush1.msra.mxu0 0.0
        %526 = vmatprep.subr.mxu0 0.0
        %527 = vmatpush1.msra.mxu0 0.0
        %528 = vmatprep.subr.mxu0 0.0
        %529 = vmatpush1.msra.mxu0 0.0
        %530 = vmatprep.subr.mxu0 0.0
        %531 = vmatpush1.msra.mxu0 0.0
        %532 = vmatprep.subr.mxu0 0.0
        %533 = vmatpush1.msra.mxu0 0.0
        %534 = vmatprep.subr.mxu0 0.0
        %535 = vmatpush1.msra.mxu0 0.0
        %536 = vmatprep.subr.mxu0 0.0
        %537 = vmatpush1.msra.mxu0 0.0
        %538 = vmatprep.mubr.f32.mxu0 0.0
        %539 = vmatmul.mubr.f32.gmra.mrb[0].mxu0 %v472
        %v540 = vpop.f32.mrb[0].mxu0
        %v541 = vadd.f32 0.0, %v540
        %v542 = vpop.f32.mrb[0].mxu0
        %543 = vdwg.mxu0
        %544 = vst [vmem:[#allocation2] sm:$0x3] %v468
        %545 = vst [vmem:[#allocation2 + $0x2] sm:$0x3] %v541
        %s546 = scalar_lea.vmem [#allocation2], 4
        %547 = vst [vmem:[%s546 - $0x2] sm:$0xc] %v468
        %548 = vst [vmem:[%s546] sm:$0xc] %v541
        %s549 = scalar_lea.vmem [#allocation2], 8
        %550 = vst [vmem:[%s549 - $0x4] sm:$0x30] %v468
        %551 = vst [vmem:[%s549 - $0x2] sm:$0x30] %v541
        %s552 = scalar_lea.vmem [#allocation2], 12
        %553 = vst [vmem:[%s552 - $0x6] sm:$0xc0] %v468
        %554 = vst [vmem:[%s552 - $0x4] sm:$0xc0] %v541
        loop: start=0, step=1, limit=3
        $region57: #{tpu_custom_call.1} parent=39 // loop_pre_header
          _
        $region58: #{tpu_custom_call.1} parent=39 // loop_header
          %s556 = sphi 0, %s560
          %p557 = scmp.ge.s32.totalorder %s556, 3
          %v561 = vphi 0.0, %v1015
          %v562 = vphi 0.0, %v1016
          %v563 = vphi 0.0, %v1003
          %v564 = vphi 0.0, %v1004
        $region59: #{tpu_custom_call.1} parent=39 // loop_header_branch
          %559 = sbr.rel (%p557) target = $region63
        $region60: #{tpu_custom_call.1} parent=39 // loop_body
          %s565 = smul.u32 %s556, 4
          %s566 = scalar_lea.vmem [#allocation2], %s565
          %v567 = vld [vmem:[%s566] sm:$0x3]
          %v568 = vld [vmem:[%s566 + $0x2] sm:$0x3]
          %v569 = vld [vmem:[%s322] sm:$0xff]
          %v570 = vld [vmem:[%s322 + $0x8] sm:$0xff]
          %v571 = vld [vmem:[%s322 + $0x10] sm:$0xff]
          %v572 = vld [vmem:[%s322 + $0x18] sm:$0xff]
          %v573 = vld [vmem:[%s322 + $0x20] sm:$0xff]
          %v574 = vld [vmem:[%s322 + $0x28] sm:$0xff]
          %v575 = vld [vmem:[%s322 + $0x30] sm:$0xff]
          %v576 = vld [vmem:[%s322 + $0x38] sm:$0xff]
          %578 = vrot.lane.b32.xlu0 %v561, 32
          %v579 = vpop.permute.xlu0 %578
          %v580 = vsel %vm397, %v579, 0
          %582 = vmatprep.subr.mxu0 0.0
          %583 = vmatpush1.msra.mxu0 %v569
          %584 = vmatprep.subr.mxu0 0.0
          %585 = vmatpush1.msra.mxu0 %v570
          %586 = vmatprep.subr.mxu0 0.0
          %587 = vmatpush1.msra.mxu0 %v571
          %588 = vmatprep.subr.mxu0 0.0
          %589 = vmatpush1.msra.mxu0 %v572
          %590 = vmatprep.subr.mxu0 0.0
          %591 = vmatpush1.msra.mxu0 0.0
          %592 = vmatprep.subr.mxu0 0.0
          %593 = vmatpush1.msra.mxu0 0.0
          %594 = vmatprep.subr.mxu0 0.0
          %595 = vmatpush1.msra.mxu0 0.0
          %596 = vmatprep.subr.mxu0 0.0
          %597 = vmatpush1.msra.mxu0 0.0
          %598 = vmatprep.subr.mxu0 0.0
          %599 = vmatpush1.msra.mxu0 0.0
          %600 = vmatprep.subr.mxu0 0.0
          %601 = vmatpush1.msra.mxu0 0.0
          %602 = vmatprep.subr.mxu0 0.0
          %603 = vmatpush1.msra.mxu0 0.0
          %604 = vmatprep.subr.mxu0 0.0
          %605 = vmatpush1.msra.mxu0 0.0
          %606 = vmatprep.subr.mxu0 0.0
          %607 = vmatpush1.msra.mxu0 0.0
          %608 = vmatprep.subr.mxu0 0.0
          %609 = vmatpush1.msra.mxu0 0.0
          %610 = vmatprep.subr.mxu0 0.0
          %611 = vmatpush1.msra.mxu0 0.0
          %612 = vmatprep.subr.mxu0 0.0
          %613 = vmatpush1.msra.mxu0 0.0
          %614 = vmatprep.subr.mxu0 0.0
          %615 = vmatpush1.msra.mxu0 0.0
          %616 = vmatprep.subr.mxu0 0.0
          %617 = vmatpush1.msra.mxu0 0.0
          %618 = vmatprep.subr.mxu0 0.0
          %619 = vmatpush1.msra.mxu0 0.0
          %620 = vmatprep.subr.mxu0 0.0
          %621 = vmatpush1.msra.mxu0 0.0
          %622 = vmatprep.subr.mxu0 0.0
          %623 = vmatpush1.msra.mxu0 0.0
          %624 = vmatprep.subr.mxu0 0.0
          %625 = vmatpush1.msra.mxu0 0.0
          %626 = vmatprep.subr.mxu0 0.0
          %627 = vmatpush1.msra.mxu0 0.0
          %628 = vmatprep.subr.mxu0 0.0
          %629 = vmatpush1.msra.mxu0 0.0
          %630 = vmatprep.subr.mxu0 0.0
          %631 = vmatpush1.msra.mxu0 0.0
          %632 = vmatprep.subr.mxu0 0.0
          %633 = vmatpush1.msra.mxu0 0.0
          %634 = vmatprep.subr.mxu0 0.0
          %635 = vmatpush1.msra.mxu0 0.0
          %636 = vmatprep.subr.mxu0 0.0
          %637 = vmatpush1.msra.mxu0 0.0
          %638 = vmatprep.subr.mxu0 0.0
          %639 = vmatpush1.msra.mxu0 0.0
          %640 = vmatprep.subr.mxu0 0.0
          %641 = vmatpush1.msra.mxu0 0.0
          %642 = vmatprep.subr.mxu0 0.0
          %643 = vmatpush1.msra.mxu0 0.0
          %644 = vmatprep.subr.mxu0 0.0
          %645 = vmatpush1.msra.mxu0 0.0
          %646 = vmatprep.mubr.f32.mxu0 0.0
          %647 = vmatmul.mubr.f32.gmra.mrb[0].mxu0 %v580
          %v648 = vpop.f32.mrb[0].mxu0
          %v649 = vadd.f32 0.0, %v648
          %v650 = vpop.f32.mrb[0].mxu0
          %651 = vdwg.mxu0
          %653 = vrot.lane.b32.xlu0 %v562, 32
          %v654 = vpop.permute.xlu0 %653
          %v655 = vsel %vm397, %v654, 0
          %657 = vmatprep.subr.mxu0 0.0
          %658 = vmatpush1.msra.mxu0 %v573
          %659 = vmatprep.subr.mxu0 0.0
          %660 = vmatpush1.msra.mxu0 %v574
          %661 = vmatprep.subr.mxu0 0.0
          %662 = vmatpush1.msra.mxu0 %v575
          %663 = vmatprep.subr.mxu0 0.0
          %664 = vmatpush1.msra.mxu0 %v576
          %665 = vmatprep.subr.mxu0 0.0
          %666 = vmatpush1.msra.mxu0 0.0
          %667 = vmatprep.subr.mxu0 0.0
          %668 = vmatpush1.msra.mxu0 0.0
          %669 = vmatprep.subr.mxu0 0.0
          %670 = vmatpush1.msra.mxu0 0.0
          %671 = vmatprep.subr.mxu0 0.0
          %672 = vmatpush1.msra.mxu0 0.0
          %673 = vmatprep.subr.mxu0 0.0
          %674 = vmatpush1.msra.mxu0 0.0
          %675 = vmatprep.subr.mxu0 0.0
          %676 = vmatpush1.msra.mxu0 0.0
          %677 = vmatprep.subr.mxu0 0.0
          %678 = vmatpush1.msra.mxu0 0.0
          %679 = vmatprep.subr.mxu0 0.0
          %680 = vmatpush1.msra.mxu0 0.0
          %681 = vmatprep.subr.mxu0 0.0
          %682 = vmatpush1.msra.mxu0 0.0
          %683 = vmatprep.subr.mxu0 0.0
          %684 = vmatpush1.msra.mxu0 0.0
          %685 = vmatprep.subr.mxu0 0.0
          %686 = vmatpush1.msra.mxu0 0.0
          %687 = vmatprep.subr.mxu0 0.0
          %688 = vmatpush1.msra.mxu0 0.0
          %689 = vmatprep.subr.mxu0 0.0
          %690 = vmatpush1.msra.mxu0 0.0
          %691 = vmatprep.subr.mxu0 0.0
          %692 = vmatpush1.msra.mxu0 0.0
          %693 = vmatprep.subr.mxu0 0.0
          %694 = vmatpush1.msra.mxu0 0.0
          %695 = vmatprep.subr.mxu0 0.0
          %696 = vmatpush1.msra.mxu0 0.0
          %697 = vmatprep.subr.mxu0 0.0
          %698 = vmatpush1.msra.mxu0 0.0
          %699 = vmatprep.subr.mxu0 0.0
          %700 = vmatpush1.msra.mxu0 0.0
          %701 = vmatprep.subr.mxu0 0.0
          %702 = vmatpush1.msra.mxu0 0.0
          %703 = vmatprep.subr.mxu0 0.0
          %704 = vmatpush1.msra.mxu0 0.0
          %705 = vmatprep.subr.mxu0 0.0
          %706 = vmatpush1.msra.mxu0 0.0
          %707 = vmatprep.subr.mxu0 0.0
          %708 = vmatpush1.msra.mxu0 0.0
          %709 = vmatprep.subr.mxu0 0.0
          %710 = vmatpush1.msra.mxu0 0.0
          %711 = vmatprep.subr.mxu0 0.0
          %712 = vmatpush1.msra.mxu0 0.0
          %713 = vmatprep.subr.mxu0 0.0
          %714 = vmatpush1.msra.mxu0 0.0
          %715 = vmatprep.subr.mxu0 0.0
          %716 = vmatpush1.msra.mxu0 0.0
          %717 = vmatprep.subr.mxu0 0.0
          %718 = vmatpush1.msra.mxu0 0.0
          %719 = vmatprep.subr.mxu0 0.0
          %720 = vmatpush1.msra.mxu0 0.0
          %721 = vmatprep.mubr.f32.mxu0 0.0
          %722 = vmatmul.mubr.f32.gmra.mrb[0].mxu0 %v655
          %v723 = vpop.f32.mrb[0].mxu0
          %v724 = vadd.f32 0.0, %v723
          %v725 = vpop.f32.mrb[0].mxu0
          %726 = vdwg.mxu0
          %v727 = vadd.f32 %v567, %v649
          %v728 = vadd.f32 %v568, %v724
          %v729 = vld [vmem:[%s384] sm:$0x1]
          %v730 = vld [vmem:[%s384 + $0x1] sm:$0x1]
          %v733 = vlaneseq
          %v734 = vshrl.u32 %v733, 7
          %v735 = vsub.s32 0, %v734
          %v736 = vrot.slane %v729, %v735
          %v737 = vlaneseq
          %v738 = vshrl.u32 %v737, 7
          %v739 = vsub.s32 0, %v738
          %v740 = vrot.slane %v730, %v739
          %v743 = vadd.f32 %v727, %v736
          %v744 = vadd.f32 %v728, %v740
          %v745 = vxor.u32 %v743, 2147483648
          %v746 = vxor.u32 %v744, 2147483648
          %v747 = vmul.f32 %v745, 1.442695
          %v748 = vpow.pop %v747
          %v749 = vmul.f32 %v746, 1.442695
          %v750 = vpow.pop %v749
          %v751 = vadd.f32 %v748, 1.0
          %v752 = vadd.f32 %v750, 1.0
          %v753 = vrcp.pop %v751
          %v754 = vmul.f32 1.0, %v753
          %v755 = vrcp.pop %v752
          %v756 = vmul.f32 1.0, %v755
          %v757 = vmul.f32 %v754, 2.0
          %v758 = vmul.f32 %v756, 2.0
          %v759 = vsub.f32 %v757, 1.0
          %v760 = vsub.f32 %v758, 1.0
          %v761 = vmul.f32 %v754, %v563
          %v762 = vmul.f32 %v756, %v564
          %765 = vrot.lane.b32.xlu0 %v759, 64
          %v766 = vpop.permute.xlu0 %765
          %767 = vrot.lane.b32.xlu0 %v760, 64
          %v768 = vpop.permute.xlu0 %767
          %v771 = vmul.f32 %v754, %v766
          %v772 = vmul.f32 %v756, %v768
          %775 = vrot.lane.b32.xlu0 %v771, 32
          %v776 = vpop.permute.xlu0 %775
          %777 = vrot.lane.b32.xlu0 %v772, 32
          %v778 = vpop.permute.xlu0 %777
          %v781 = vadd.f32 %v761, %v776
          %v782 = vadd.f32 %v762, %v778
          %v783 = vtanh.pop %v781
          %v784 = vtanh.pop %v782
          %787 = vrot.lane.b32.xlu0 %v783, 64
          %v788 = vpop.permute.xlu0 %787
          %789 = vrot.lane.b32.xlu0 %v784, 64
          %v790 = vpop.permute.xlu0 %789
          %v793 = vmul.f32 %v754, %v788
          %v794 = vmul.f32 %v756, %v790
          %v795 = vld [vmem:[%s331] sm:$0xff]
          %v796 = vld [vmem:[%s331 + $0x8] sm:$0xff]
          %v797 = vld [vmem:[%s331 + $0x10] sm:$0xff]
          %v798 = vld [vmem:[%s331 + $0x18] sm:$0xff]
          %v799 = vld [vmem:[%s331 + $0x20] sm:$0xff]
          %v800 = vld [vmem:[%s331 + $0x28] sm:$0xff]
          %v801 = vld [vmem:[%s331 + $0x30] sm:$0xff]
          %v802 = vld [vmem:[%s331 + $0x38] sm:$0xff]
          %v803 = vld [vmem:[%s384] sm:$0x1]
          %v804 = vld [vmem:[%s384 + $0x1] sm:$0x1]
          %v807 = vlaneseq
          %v808 = vshrl.u32 %v807, 7
          %v809 = vsub.s32 0, %v808
          %v810 = vrot.slane %v803, %v809
          %v811 = vlaneseq
          %v812 = vshrl.u32 %v811, 7
          %v813 = vsub.s32 0, %v812
          %v814 = vrot.slane %v804, %v813
          %818 = vrot.lane.b32.xlu0 %v793, 32
          %v819 = vpop.permute.xlu0 %818
          %v820 = vsel %vm397, %v819, 0
          %822 = vmatprep.subr.mxu0 0.0
          %823 = vmatpush1.msra.mxu0 %v795
          %824 = vmatprep.subr.mxu0 0.0
          %825 = vmatpush1.msra.mxu0 %v796
          %826 = vmatprep.subr.mxu0 0.0
          %827 = vmatpush1.msra.mxu0 %v797
          %828 = vmatprep.subr.mxu0 0.0
          %829 = vmatpush1.msra.mxu0 %v798
          %830 = vmatprep.subr.mxu0 0.0
          %831 = vmatpush1.msra.mxu0 0.0
          %832 = vmatprep.subr.mxu0 0.0
          %833 = vmatpush1.msra.mxu0 0.0
          %834 = vmatprep.subr.mxu0 0.0
          %835 = vmatpush1.msra.mxu0 0.0
          %836 = vmatprep.subr.mxu0 0.0
          %837 = vmatpush1.msra.mxu0 0.0
          %838 = vmatprep.subr.mxu0 0.0
          %839 = vmatpush1.msra.mxu0 0.0
          %840 = vmatprep.subr.mxu0 0.0
          %841 = vmatpush1.msra.mxu0 0.0
          %842 = vmatprep.subr.mxu0 0.0
          %843 = vmatpush1.msra.mxu0 0.0
          %844 = vmatprep.subr.mxu0 0.0
          %845 = vmatpush1.msra.mxu0 0.0
          %846 = vmatprep.subr.mxu0 0.0
          %847 = vmatpush1.msra.mxu0 0.0
          %848 = vmatprep.subr.mxu0 0.0
          %849 = vmatpush1.msra.mxu0 0.0
          %850 = vmatprep.subr.mxu0 0.0
          %851 = vmatpush1.msra.mxu0 0.0
          %852 = vmatprep.subr.mxu0 0.0
          %853 = vmatpush1.msra.mxu0 0.0
          %854 = vmatprep.subr.mxu0 0.0
          %855 = vmatpush1.msra.mxu0 0.0
          %856 = vmatprep.subr.mxu0 0.0
          %857 = vmatpush1.msra.mxu0 0.0
          %858 = vmatprep.subr.mxu0 0.0
          %859 = vmatpush1.msra.mxu0 0.0
          %860 = vmatprep.subr.mxu0 0.0
          %861 = vmatpush1.msra.mxu0 0.0
          %862 = vmatprep.subr.mxu0 0.0
          %863 = vmatpush1.msra.mxu0 0.0
          %864 = vmatprep.subr.mxu0 0.0
          %865 = vmatpush1.msra.mxu0 0.0
          %866 = vmatprep.subr.mxu0 0.0
          %867 = vmatpush1.msra.mxu0 0.0
          %868 = vmatprep.subr.mxu0 0.0
          %869 = vmatpush1.msra.mxu0 0.0
          %870 = vmatprep.subr.mxu0 0.0
          %871 = vmatpush1.msra.mxu0 0.0
          %872 = vmatprep.subr.mxu0 0.0
          %873 = vmatpush1.msra.mxu0 0.0
          %874 = vmatprep.subr.mxu0 0.0
          %875 = vmatpush1.msra.mxu0 0.0
          %876 = vmatprep.subr.mxu0 0.0
          %877 = vmatpush1.msra.mxu0 0.0
          %878 = vmatprep.subr.mxu0 0.0
          %879 = vmatpush1.msra.mxu0 0.0
          %880 = vmatprep.subr.mxu0 0.0
          %881 = vmatpush1.msra.mxu0 0.0
          %882 = vmatprep.subr.mxu0 0.0
          %883 = vmatpush1.msra.mxu0 0.0
          %884 = vmatprep.subr.mxu0 0.0
          %885 = vmatpush1.msra.mxu0 0.0
          %886 = vmatprep.mubr.f32.mxu0 0.0
          %887 = vmatmul.mubr.f32.gmra.mrb[0].mxu0 %v820
          %v888 = vpop.f32.mrb[0].mxu0
          %v889 = vadd.f32 %v810, %v888
          %v890 = vpop.f32.mrb[0].mxu0
          %891 = vdwg.mxu0
          %893 = vrot.lane.b32.xlu0 %v794, 32
          %v894 = vpop.permute.xlu0 %893
          %v895 = vsel %vm397, %v894, 0
          %897 = vmatprep.subr.mxu0 0.0
          %898 = vmatpush1.msra.mxu0 %v799
          %899 = vmatprep.subr.mxu0 0.0
          %900 = vmatpush1.msra.mxu0 %v800
          %901 = vmatprep.subr.mxu0 0.0
          %902 = vmatpush1.msra.mxu0 %v801
          %903 = vmatprep.subr.mxu0 0.0
          %904 = vmatpush1.msra.mxu0 %v802
          %905 = vmatprep.subr.mxu0 0.0
          %906 = vmatpush1.msra.mxu0 0.0
          %907 = vmatprep.subr.mxu0 0.0
          %908 = vmatpush1.msra.mxu0 0.0
          %909 = vmatprep.subr.mxu0 0.0
          %910 = vmatpush1.msra.mxu0 0.0
          %911 = vmatprep.subr.mxu0 0.0
          %912 = vmatpush1.msra.mxu0 0.0
          %913 = vmatprep.subr.mxu0 0.0
          %914 = vmatpush1.msra.mxu0 0.0
          %915 = vmatprep.subr.mxu0 0.0
          %916 = vmatpush1.msra.mxu0 0.0
          %917 = vmatprep.subr.mxu0 0.0
          %918 = vmatpush1.msra.mxu0 0.0
          %919 = vmatprep.subr.mxu0 0.0
          %920 = vmatpush1.msra.mxu0 0.0
          %921 = vmatprep.subr.mxu0 0.0
          %922 = vmatpush1.msra.mxu0 0.0
          %923 = vmatprep.subr.mxu0 0.0
          %924 = vmatpush1.msra.mxu0 0.0
          %925 = vmatprep.subr.mxu0 0.0
          %926 = vmatpush1.msra.mxu0 0.0
          %927 = vmatprep.subr.mxu0 0.0
          %928 = vmatpush1.msra.mxu0 0.0
          %929 = vmatprep.subr.mxu0 0.0
          %930 = vmatpush1.msra.mxu0 0.0
          %931 = vmatprep.subr.mxu0 0.0
          %932 = vmatpush1.msra.mxu0 0.0
          %933 = vmatprep.subr.mxu0 0.0
          %934 = vmatpush1.msra.mxu0 0.0
          %935 = vmatprep.subr.mxu0 0.0
          %936 = vmatpush1.msra.mxu0 0.0
          %937 = vmatprep.subr.mxu0 0.0
          %938 = vmatpush1.msra.mxu0 0.0
          %939 = vmatprep.subr.mxu0 0.0
          %940 = vmatpush1.msra.mxu0 0.0
          %941 = vmatprep.subr.mxu0 0.0
          %942 = vmatpush1.msra.mxu0 0.0
          %943 = vmatprep.subr.mxu0 0.0
          %944 = vmatpush1.msra.mxu0 0.0
          %945 = vmatprep.subr.mxu0 0.0
          %946 = vmatpush1.msra.mxu0 0.0
          %947 = vmatprep.subr.mxu0 0.0
          %948 = vmatpush1.msra.mxu0 0.0
          %949 = vmatprep.subr.mxu0 0.0
          %950 = vmatpush1.msra.mxu0 0.0
          %951 = vmatprep.subr.mxu0 0.0
          %952 = vmatpush1.msra.mxu0 0.0
          %953 = vmatprep.subr.mxu0 0.0
          %954 = vmatpush1.msra.mxu0 0.0
          %955 = vmatprep.subr.mxu0 0.0
          %956 = vmatpush1.msra.mxu0 0.0
          %957 = vmatprep.subr.mxu0 0.0
          %958 = vmatpush1.msra.mxu0 0.0
          %959 = vmatprep.subr.mxu0 0.0
          %960 = vmatpush1.msra.mxu0 0.0
          %961 = vmatprep.mubr.f32.mxu0 0.0
          %962 = vmatmul.mubr.f32.gmra.mrb[0].mxu0 %v895
          %v963 = vpop.f32.mrb[0].mxu0
          %v964 = vadd.f32 %v814, %v963
          %v965 = vpop.f32.mrb[0].mxu0
          %966 = vdwg.mxu0
          %v967 = vxor.u32 %v889, 2147483648
          %v968 = vxor.u32 %v964, 2147483648
          %v969 = vmul.f32 %v967, 1.442695
          %v970 = vpow.pop %v969
          %v971 = vmul.f32 %v968, 1.442695
          %v972 = vpow.pop %v971
          %v973 = vadd.f32 %v970, 1.0
          %v974 = vadd.f32 %v972, 1.0
          %v975 = vrcp.pop %v973
          %v976 = vmul.f32 1.0, %v975
          %v977 = vrcp.pop %v974
          %v978 = vmul.f32 1.0, %v977
          %v979 = vmul.f32 %v976, 2.0
          %v980 = vmul.f32 %v978, 2.0
          %v981 = vsub.f32 %v979, 1.0
          %v982 = vsub.f32 %v980, 1.0
          %v983 = vmul.f32 %v976, %v781
          %v984 = vmul.f32 %v978, %v782
          %987 = vrot.lane.b32.xlu0 %v981, 64
          %v988 = vpop.permute.xlu0 %987
          %989 = vrot.lane.b32.xlu0 %v982, 64
          %v990 = vpop.permute.xlu0 %989
          %v993 = vmul.f32 %v976, %v988
          %v994 = vmul.f32 %v978, %v990
          %997 = vrot.lane.b32.xlu0 %v993, 32
          %v998 = vpop.permute.xlu0 %997
          %999 = vrot.lane.b32.xlu0 %v994, 32
          %v1000 = vpop.permute.xlu0 %999
          %v1003 = vadd.f32 %v983, %v998
          %v1004 = vadd.f32 %v984, %v1000
          %v1005 = vtanh.pop %v1003
          %v1006 = vtanh.pop %v1004
          %1009 = vrot.lane.b32.xlu0 %v1005, 64
          %v1010 = vpop.permute.xlu0 %1009
          %1011 = vrot.lane.b32.xlu0 %v1006, 64
          %v1012 = vpop.permute.xlu0 %1011
          %v1015 = vmul.f32 %v976, %v1010
          %v1016 = vmul.f32 %v978, %v1012
          %1021 = vrot.lane.b32.xlu0 %v1015, 64
          %v1022 = vpop.permute.xlu0 %1021
          %1023 = vrot.lane.b32.xlu0 %v1016, 64
          %v1024 = vpop.permute.xlu0 %1023
          %v1027 = vsel %vm397, %v819, %v1022
          %v1028 = vsel %vm397, %v894, %v1024
          %s1029 = scalar_lea.vmem %s376, %s565 [#allocation11]
          %vm1030 = vcmask 517120
          %1031 = vst.msk [vmem:[%s1029] sm:$0x3] %vm1030, %v1027
          %1032 = vst.msk [vmem:[%s1029 + $0x2] sm:$0x3] %vm1030, %v1028
        $region61: #{tpu_custom_call.1} parent=39 // loop_footer
          %s560 = sadd.s32 1, %s556
        $region62: #{tpu_custom_call.1} parent=39 // loop_footer_branch
          %555 = sbr.rel target = $region58
        $region63: #{tpu_custom_call.1} parent=39 // loop_exit
          _
        %v1033 = vld [vmem:[%s552] sm:$0x3]
        %v1034 = vld [vmem:[%s552 + $0x2] sm:$0x3]
        %v1035 = vld [vmem:[%s322] sm:$0xff]
        %v1036 = vld [vmem:[%s322 + $0x8] sm:$0xff]
        %v1037 = vld [vmem:[%s322 + $0x10] sm:$0xff]
        %v1038 = vld [vmem:[%s322 + $0x18] sm:$0xff]
        %v1039 = vld [vmem:[%s322 + $0x20] sm:$0xff]
        %v1040 = vld [vmem:[%s322 + $0x28] sm:$0xff]
        %v1041 = vld [vmem:[%s322 + $0x30] sm:$0xff]
        %v1042 = vld [vmem:[%s322 + $0x38] sm:$0xff]
        %1044 = vrot.lane.b32.xlu0 %v561, 32
        %v1045 = vpop.permute.xlu0 %1044
        %v1046 = vsel %vm397, %v1045, 0
        %1048 = vmatprep.subr.mxu0 0.0
        %1049 = vmatpush1.msra.mxu0 %v1035
        %1050 = vmatprep.subr.mxu0 0.0
        %1051 = vmatpush1.msra.mxu0 %v1036
        %1052 = vmatprep.subr.mxu0 0.0
        %1053 = vmatpush1.msra.mxu0 %v1037
        %1054 = vmatprep.subr.mxu0 0.0
        %1055 = vmatpush1.msra.mxu0 %v1038
        %1056 = vmatprep.subr.mxu0 0.0
        %1057 = vmatpush1.msra.mxu0 0.0
        %1058 = vmatprep.subr.mxu0 0.0
        %1059 = vmatpush1.msra.mxu0 0.0
        %1060 = vmatprep.subr.mxu0 0.0
        %1061 = vmatpush1.msra.mxu0 0.0
        %1062 = vmatprep.subr.mxu0 0.0
        %1063 = vmatpush1.msra.mxu0 0.0
        %1064 = vmatprep.subr.mxu0 0.0
        %1065 = vmatpush1.msra.mxu0 0.0
        %1066 = vmatprep.subr.mxu0 0.0
        %1067 = vmatpush1.msra.mxu0 0.0
        %1068 = vmatprep.subr.mxu0 0.0
        %1069 = vmatpush1.msra.mxu0 0.0
        %1070 = vmatprep.subr.mxu0 0.0
        %1071 = vmatpush1.msra.mxu0 0.0
        %1072 = vmatprep.subr.mxu0 0.0
        %1073 = vmatpush1.msra.mxu0 0.0
        %1074 = vmatprep.subr.mxu0 0.0
        %1075 = vmatpush1.msra.mxu0 0.0
        %1076 = vmatprep.subr.mxu0 0.0
        %1077 = vmatpush1.msra.mxu0 0.0
        %1078 = vmatprep.subr.mxu0 0.0
        %1079 = vmatpush1.msra.mxu0 0.0
        %1080 = vmatprep.subr.mxu0 0.0
        %1081 = vmatpush1.msra.mxu0 0.0
        %1082 = vmatprep.subr.mxu0 0.0
        %1083 = vmatpush1.msra.mxu0 0.0
        %1084 = vmatprep.subr.mxu0 0.0
        %1085 = vmatpush1.msra.mxu0 0.0
        %1086 = vmatprep.subr.mxu0 0.0
        %1087 = vmatpush1.msra.mxu0 0.0
        %1088 = vmatprep.subr.mxu0 0.0
        %1089 = vmatpush1.msra.mxu0 0.0
        %1090 = vmatprep.subr.mxu0 0.0
        %1091 = vmatpush1.msra.mxu0 0.0
        %1092 = vmatprep.subr.mxu0 0.0
        %1093 = vmatpush1.msra.mxu0 0.0
        %1094 = vmatprep.subr.mxu0 0.0
        %1095 = vmatpush1.msra.mxu0 0.0
        %1096 = vmatprep.subr.mxu0 0.0
        %1097 = vmatpush1.msra.mxu0 0.0
        %1098 = vmatprep.subr.mxu0 0.0
        %1099 = vmatpush1.msra.mxu0 0.0
        %1100 = vmatprep.subr.mxu0 0.0
        %1101 = vmatpush1.msra.mxu0 0.0
        %1102 = vmatprep.subr.mxu0 0.0
        %1103 = vmatpush1.msra.mxu0 0.0
        %1104 = vmatprep.subr.mxu0 0.0
        %1105 = vmatpush1.msra.mxu0 0.0
        %1106 = vmatprep.subr.mxu0 0.0
        %1107 = vmatpush1.msra.mxu0 0.0
        %1108 = vmatprep.subr.mxu0 0.0
        %1109 = vmatpush1.msra.mxu0 0.0
        %1110 = vmatprep.subr.mxu0 0.0
        %1111 = vmatpush1.msra.mxu0 0.0
        %1112 = vmatprep.mubr.f32.mxu0 0.0
        %1113 = vmatmul.mubr.f32.gmra.mrb[0].mxu0 %v1046
        %v1114 = vpop.f32.mrb[0].mxu0
        %v1115 = vadd.f32 0.0, %v1114
        %v1116 = vpop.f32.mrb[0].mxu0
        %1117 = vdwg.mxu0
        %1119 = vrot.lane.b32.xlu0 %v562, 32
        %v1120 = vpop.permute.xlu0 %1119
        %v1121 = vsel %vm397, %v1120, 0
        %1123 = vmatprep.subr.mxu0 0.0
        %1124 = vmatpush1.msra.mxu0 %v1039
        %1125 = vmatprep.subr.mxu0 0.0
        %1126 = vmatpush1.msra.mxu0 %v1040
        %1127 = vmatprep.subr.mxu0 0.0
        %1128 = vmatpush1.msra.mxu0 %v1041
        %1129 = vmatprep.subr.mxu0 0.0
        %1130 = vmatpush1.msra.mxu0 %v1042
        %1131 = vmatprep.subr.mxu0 0.0
        %1132 = vmatpush1.msra.mxu0 0.0
        %1133 = vmatprep.subr.mxu0 0.0
        %1134 = vmatpush1.msra.mxu0 0.0
        %1135 = vmatprep.subr.mxu0 0.0
        %1136 = vmatpush1.msra.mxu0 0.0
        %1137 = vmatprep.subr.mxu0 0.0
        %1138 = vmatpush1.msra.mxu0 0.0
        %1139 = vmatprep.subr.mxu0 0.0
        %1140 = vmatpush1.msra.mxu0 0.0
        %1141 = vmatprep.subr.mxu0 0.0
        %1142 = vmatpush1.msra.mxu0 0.0
        %1143 = vmatprep.subr.mxu0 0.0
        %1144 = vmatpush1.msra.mxu0 0.0
        %1145 = vmatprep.subr.mxu0 0.0
        %1146 = vmatpush1.msra.mxu0 0.0
        %1147 = vmatprep.subr.mxu0 0.0
        %1148 = vmatpush1.msra.mxu0 0.0
        %1149 = vmatprep.subr.mxu0 0.0
        %1150 = vmatpush1.msra.mxu0 0.0
        %1151 = vmatprep.subr.mxu0 0.0
        %1152 = vmatpush1.msra.mxu0 0.0
        %1153 = vmatprep.subr.mxu0 0.0
        %1154 = vmatpush1.msra.mxu0 0.0
        %1155 = vmatprep.subr.mxu0 0.0
        %1156 = vmatpush1.msra.mxu0 0.0
        %1157 = vmatprep.subr.mxu0 0.0
        %1158 = vmatpush1.msra.mxu0 0.0
        %1159 = vmatprep.subr.mxu0 0.0
        %1160 = vmatpush1.msra.mxu0 0.0
        %1161 = vmatprep.subr.mxu0 0.0
        %1162 = vmatpush1.msra.mxu0 0.0
        %1163 = vmatprep.subr.mxu0 0.0
        %1164 = vmatpush1.msra.mxu0 0.0
        %1165 = vmatprep.subr.mxu0 0.0
        %1166 = vmatpush1.msra.mxu0 0.0
        %1167 = vmatprep.subr.mxu0 0.0
        %1168 = vmatpush1.msra.mxu0 0.0
        %1169 = vmatprep.subr.mxu0 0.0
        %1170 = vmatpush1.msra.mxu0 0.0
        %1171 = vmatprep.subr.mxu0 0.0
        %1172 = vmatpush1.msra.mxu0 0.0
        %1173 = vmatprep.subr.mxu0 0.0
        %1174 = vmatpush1.msra.mxu0 0.0
        %1175 = vmatprep.subr.mxu0 0.0
        %1176 = vmatpush1.msra.mxu0 0.0
        %1177 = vmatprep.subr.mxu0 0.0
        %1178 = vmatpush1.msra.mxu0 0.0
        %1179 = vmatprep.subr.mxu0 0.0
        %1180 = vmatpush1.msra.mxu0 0.0
        %1181 = vmatprep.subr.mxu0 0.0
        %1182 = vmatpush1.msra.mxu0 0.0
        %1183 = vmatprep.subr.mxu0 0.0
        %1184 = vmatpush1.msra.mxu0 0.0
        %1185 = vmatprep.subr.mxu0 0.0
        %1186 = vmatpush1.msra.mxu0 0.0
        %1187 = vmatprep.mubr.f32.mxu0 0.0
        %1188 = vmatmul.mubr.f32.gmra.mrb[0].mxu0 %v1121
        %v1189 = vpop.f32.mrb[0].mxu0
        %v1190 = vadd.f32 0.0, %v1189
        %v1191 = vpop.f32.mrb[0].mxu0
        %1192 = vdwg.mxu0
        %v1193 = vadd.f32 %v1033, %v1115
        %v1194 = vadd.f32 %v1034, %v1190
        %v1195 = vld [vmem:[%s384] sm:$0x1]
        %v1196 = vld [vmem:[%s384 + $0x1] sm:$0x1]
        %v1199 = vlaneseq
        %v1200 = vshrl.u32 %v1199, 7
        %v1201 = vsub.s32 0, %v1200
        %v1202 = vrot.slane %v1195, %v1201
        %v1203 = vlaneseq
        %v1204 = vshrl.u32 %v1203, 7
        %v1205 = vsub.s32 0, %v1204
        %v1206 = vrot.slane %v1196, %v1205
        %v1209 = vadd.f32 %v1193, %v1202
        %v1210 = vadd.f32 %v1194, %v1206
        %v1211 = vxor.u32 %v1209, 2147483648
        %v1212 = vxor.u32 %v1210, 2147483648
        %v1213 = vmul.f32 %v1211, 1.442695
        %v1214 = vpow.pop %v1213
        %v1215 = vmul.f32 %v1212, 1.442695
        %v1216 = vpow.pop %v1215
        %v1217 = vadd.f32 %v1214, 1.0
        %v1218 = vadd.f32 %v1216, 1.0
        %v1219 = vrcp.pop %v1217
        %v1220 = vmul.f32 1.0, %v1219
        %v1221 = vrcp.pop %v1218
        %v1222 = vmul.f32 1.0, %v1221
        %v1223 = vmul.f32 %v1220, 2.0
        %v1224 = vmul.f32 %v1222, 2.0
        %v1225 = vsub.f32 %v1223, 1.0
        %v1226 = vsub.f32 %v1224, 1.0
        %v1227 = vmul.f32 %v1220, %v563
        %v1228 = vmul.f32 %v1222, %v564
        %1231 = vrot.lane.b32.xlu0 %v1225, 64
        %v1232 = vpop.permute.xlu0 %1231
        %1233 = vrot.lane.b32.xlu0 %v1226, 64
        %v1234 = vpop.permute.xlu0 %1233
        %v1237 = vmul.f32 %v1220, %v1232
        %v1238 = vmul.f32 %v1222, %v1234
        %1241 = vrot.lane.b32.xlu0 %v1237, 32
        %v1242 = vpop.permute.xlu0 %1241
        %1243 = vrot.lane.b32.xlu0 %v1238, 32
        %v1244 = vpop.permute.xlu0 %1243
        %v1247 = vadd.f32 %v1227, %v1242
        %v1248 = vadd.f32 %v1228, %v1244
        %v1249 = vtanh.pop %v1247
        %v1250 = vtanh.pop %v1248
        %1253 = vrot.lane.b32.xlu0 %v1249, 64
        %v1254 = vpop.permute.xlu0 %1253
        %1255 = vrot.lane.b32.xlu0 %v1250, 64
        %v1256 = vpop.permute.xlu0 %1255
        %v1259 = vmul.f32 %v1220, %v1254
        %v1260 = vmul.f32 %v1222, %v1256
        %1263 = vrot.lane.b32.xlu0 %v1259, 32
        %v1264 = vpop.permute.xlu0 %1263
        %1265 = vrot.lane.b32.xlu0 %v1260, 32
        %v1266 = vpop.permute.xlu0 %1265
        %v1269 = vsel %vm397, %v1264, 0.0
        %v1270 = vsel %vm397, %v1266, 0.0
        %s1271 = scalar_lea.vmem %s376, 12 [#allocation11]
        %vm1272 = vcmask 517120
        %1273 = vst.msk [vmem:[%s1271] sm:$0x3] %vm1272, %v1269
        %1274 = vst.msk [vmem:[%s1271 + $0x2] sm:$0x3] %vm1272, %v1270
        %s1275 = sand.u32 %s166, 1
        %s1276 = scalar_lea.sflag [#allocation5], %s1275
        %s1277 = sand.u32 %s166, 1
        %s1278 = smul.addr %s1277, 16
        %s1279 = scalar_lea.vmem [#allocation11], %s1278
        // Predicated region
        $region64: #{tpu_custom_call.1} parent=39 // pred_check
          %p1280 = pneg %p176
        $region65: #{tpu_custom_call.1} parent=39 // pred_check_branch
          %1282 = sbr.rel (%p1280) target = $region67
        $region66: #{tpu_custom_call.1} parent=39 // pred_region
          #allocation13 [shape = 'u32[6]{0}', space=smem, size = 0x18, scoped, tag = 'DMA stride descriptor']
          %s1283 = smul.u32 2, %s28
          %s1285 = ssub.s32 256, 256
          %1286 = vsyncadd %s1276, %s1285
          %s1287 = smul.addr %s1283, 32
          %s1288 = scalar_lea.hbm %s5, %s1287
          %s1290 = sshll.u32 1, 14
          %s1291 = sxor.u32 4294967295, %s1290
          %s1294 = sshll.u32 7, 18
          %s1295 = sxor.u32 4294967295, %s1294
          %s1296 = sand.u32 0, %s1295
          %s1298 = sor.u32 %s1296, 0
          %s1300 = sshll.u32 3, 24
          %s1301 = sxor.u32 4294967295, %s1300
          %s1302 = sand.u32 %s1298, %s1301
          %s1304 = sor.u32 %s1302, 0
          %s1305 = sshll.u32 %s1279, 4
          %s1306 = int_to_ptr.vmem [resolvable:$true] %s1305
          %1312 = sst [smem:[#allocation13]] 64
          %s1313 = scalar_lea.smem [#allocation13], 1
          %1314 = sst [smem:[%s1313]] 128
          %s1315 = scalar_lea.smem [#allocation13], 2
          %1316 = sst [smem:[%s1315]] 2
          %s1317 = scalar_lea.smem [#allocation13], 3
          %1318 = sst [smem:[%s1317]] 32
          %s1319 = scalar_lea.smem [#allocation13], 4
          %1320 = sst [smem:[%s1319]] 32
          %s1321 = scalar_lea.smem [#allocation13], 5
          %1322 = sst [smem:[%s1321]] 2
          %1324 = dma.general %s1306, 256, %s1288, %s1276, [#allocation12], [#allocation13], %s1304, 0
        $region67: #{tpu_custom_call.1} parent=39 // pred_fallthru
          _
      $region40: #{tpu_custom_call.1} parent=5 // pred_fallthru
        _
      %p1325 = scmp.le.s32.totalorder 2, %s23
      // Predicated region
      $region68: #{tpu_custom_call.1} parent=5 // pred_check
        %p1326 = pneg %p1325
      $region69: #{tpu_custom_call.1} parent=5 // pred_check_branch
        %1328 = sbr.rel (%p1326) target = $region71
      $region70: #{tpu_custom_call.1} parent=5 // pred_region
        %s1329 = ssub.s32 %s23, 2
        // Predicated region
        $region72: #{tpu_custom_call.1} parent=70 // pred_check
          %p1330 = pneg %p182
        $region73: #{tpu_custom_call.1} parent=70 // pred_check_branch
          %1332 = sbr.rel (%p1330) target = $region75
        $region74: #{tpu_custom_call.1} parent=70 // pred_region
          %s1333 = sand.u32 %s167, 1
          %s1334 = scalar_lea.sflag [#allocation5], %s1333
          %s1335 = sand.u32 %s167, 1
          %s1336 = smul.addr %s1335, 16
          %s1337 = scalar_lea.vmem [#allocation11], %s1336
          %1338 = dma.done %s1334, 256
        $region75: #{tpu_custom_call.1} parent=70 // pred_fallthru
          _
      $region71: #{tpu_custom_call.1} parent=5 // pred_fallthru
        _
    $region6: #{tpu_custom_call.1} parent=1 // loop_footer
      %s27 = sadd.s32 1, %s23
    $region7: #{tpu_custom_call.1} parent=1 // loop_footer_branch
      %22 = sbr.rel target = $region3
    $region8: #{tpu_custom_call.1} parent=1 // loop_exit
      _
    %1339 = vsyncpa [#allocation4], 1
    %s1340 = scalar_lea.sflag [#allocation4], 1
    %1341 = vsyncpa %s1340, 1
    %1342 = vsyncpa [#allocation7], 1
    %s1343 = scalar_lea.sflag [#allocation7], 1
    %1344 = vsyncpa %s1343, 1
    %1345 = vsyncpa [#allocation10], 1
    %s1346 = scalar_lea.sflag [#allocation10], 1
    %1347 = vsyncpa %s1346, 1
    %1348 = vsyncpa [#allocation5], 1
    %s1349 = scalar_lea.sflag [#allocation5], 1
    %1350 = vsyncpa %s1349, 1

</llo_original>
